<compile_context>
chip_gen: v7x
topology: tpu7x:2x2x1
jax: 0.10.0
libtpu: 0.0.40
codegen_flags: <defaults>
</compile_context>

<pallas_src>
import jax
import jax.numpy as jnp
from jax.experimental import pallas as pl
from jax.experimental.pallas import tpu as pltpu


def _make_block_kernel(H, W, Cin, Cout, use_bf16_mxu):
    HW = H * W
    PAD = W + 1  # enough slack so every 3x3 tap shift stays inside the buffer

    def kernel(x_ref, w1_ref, b1_ref, w2_ref, b2_ref, o_ref, xpad_ref, ypad_ref):
        # x_ref : (1, Cin, H*W)    NCHW input, spatial flattened (lane-dense)
        # w1_ref: (9, Cout, Cin)   conv1 taps: w1_ref[dy*3+dx] = W1[:, :, dy, dx]
        # b1_ref: (Cout, 1)
        # w2_ref: (9, Cout, Cout)  conv2 taps
        # b2_ref: (Cout, 1)
        # o_ref : (1, Cout, H*W)   NCHW output, spatial flattened (lane-dense)
        # xpad_ref: (Cin,  PAD + H*W + PAD) f32 flat-padded activation scratch
        # ypad_ref: (Cout, PAD + H*W + PAD) f32 flat-padded activation scratch

        # Column-validity masks for the horizontally shifted taps, built once
        # from an in-register iota.  Rows that fall off the top/bottom of the
        # image need no mask: they read the zero pad strips instead.
        col = jax.lax.broadcasted_iota(jnp.int32, (1, HW), 1) % W
        valid_left = col >= 1        # dx == 0 taps read neighbour (w - 1)
        valid_right = col <= W - 2   # dx == 2 taps read neighbour (w + 1)

        def conv3x3_relu(act, pad_ref, w_ref, b_ref):
            """act: (C, H*W) f32 -> ReLU(conv3x3(act) + b): (Cout, H*W) f32."""
            C = act.shape[0]
            # Re-zero the two pad strips every step (tiny stores; correct even
            # when the batch grid axis is split across TensorCores), then write
            # the interior with a plain lane-offset store -- no reshape/concat.
            pad_ref[:, :PAD] = jnp.zeros((C, PAD), jnp.float32)
            pad_ref[:, PAD + HW:] = jnp.zeros((C, PAD), jnp.float32)
            pad_ref[:, PAD:PAD + HW] = act

            acc = jnp.zeros((Cout, HW), jnp.float32)
            # Per-tap accumulation: 9 small MXU pushes; no patch tensor is ever
            # materialized and only one tap is live at a time.
            # TODO(synk): at UNet-scale channel counts wrap this in a
            # lax.fori_loop(unroll=True) under a halo'd H-tile grid axis so the
            # live set stays bounded on v7x's 64 MiB VMEM.
            for dy in range(3):
                for dx in range(3):
                    start = PAD + (dy - 1) * W + (dx - 1)
                    tap = pad_ref[:, start:start + HW]           # (C, H*W)
                    if dx == 0:
                        tap = jnp.where(valid_left, tap, 0.0)
                    elif dx == 2:
                        tap = jnp.where(valid_right, tap, 0.0)
                    wt = w_ref[dy * 3 + dx]                      # (Cout, C)
                    if use_bf16_mxu:
                        # v6e/v7x option: bf16 MXU inputs, f32 accumulation.
                        wt = wt.astype(jnp.bfloat16)
                        tap = tap.astype(jnp.bfloat16)
                    acc = acc + jnp.dot(wt, tap,
                                        preferred_element_type=jnp.float32)
            # Bias + ReLU on fully lane-dense (Cout, H*W) f32 vregs.
            return jnp.maximum(acc + b_ref[...], 0.0)

        x = x_ref[0].astype(jnp.float32)                         # (Cin, H*W)
        y = conv3x3_relu(x, xpad_ref, w1_ref, b1_ref)            # (Cout, H*W)
        z = conv3x3_relu(y, ypad_ref, w2_ref, b2_ref)            # (Cout, H*W)
        o_ref[0] = z.astype(o_ref.dtype)                         # lane-dense store

    return kernel, PAD


def block_apply(x_nchw, params, *, use_bf16_mxu=False):
    """Fused Block forward. NCHW in -> NCHW out (PyTorch convention)."""
    N, Cin, H, W = x_nchw.shape
    Cout = params["w1"].shape[0]
    HW = H * W

    kernel, PAD = _make_block_kernel(H, W, Cin, Cout, use_bf16_mxu)

    # Free reshape: spatial flattened so H*W sits on the lane axis.
    x_flat = x_nchw.reshape(N, Cin, HW)
    # Per-tap transposed weights: wt[dy*3+dx, co, ci] = w[co, ci, dy, dx].
    w1t = jnp.transpose(params["w1"], (2, 3, 0, 1)).reshape(9, Cout, Cin)
    w2t = jnp.transpose(params["w2"], (2, 3, 0, 1)).reshape(9, Cout, Cout)
    b1 = params["b1"].reshape(Cout, 1)
    b2 = params["b2"].reshape(Cout, 1)

    flops = 2 * N * HW * 9 * (Cin * Cout + Cout * Cout)
    bytes_accessed = 4 * (x_flat.size + N * Cout * HW
                          + w1t.size + w2t.size + b1.size + b2.size)

    out = pl.pallas_call(
        kernel,
        out_shape=jax.ShapeDtypeStruct((N, Cout, HW), x_nchw.dtype),
        grid=(N,),
        in_specs=[
            pl.BlockSpec((1, Cin, HW), lambda n: (n, 0, 0)),
            pl.BlockSpec((9, Cout, Cin), lambda n: (0, 0, 0)),
            pl.BlockSpec((Cout, 1), lambda n: (0, 0)),
            pl.BlockSpec((9, Cout, Cout), lambda n: (0, 0, 0)),
            pl.BlockSpec((Cout, 1), lambda n: (0, 0)),
        ],
        out_specs=pl.BlockSpec((1, Cout, HW), lambda n: (n, 0, 0)),
        scratch_shapes=[
            pltpu.VMEM((Cin, HW + 2 * PAD), jnp.float32),
            pltpu.VMEM((Cout, HW + 2 * PAD), jnp.float32),
        ],
        compiler_params=pltpu.CompilerParams(
            dimension_semantics=("parallel",),        # batch -> both TCs on v7x
            vmem_limit_bytes=32 * 1024 * 1024,        # explicit scoped-VMEM budget
        ),
        cost_estimate=pl.CostEstimate(
            flops=flops, transcendentals=0, bytes_accessed=bytes_accessed),
    )(x_flat, w1t, b1, w2t, b2)

    # Free reshape back to NCHW.
    return out.reshape(N, Cout, H, W)


@jax.jit
def block_forward(x_nchw, params):
    """Equivalent of Block.forward: conv3x3 -> ReLU -> conv3x3 -> ReLU (NCHW)."""
    return block_apply(x_nchw, params)


def init_block_params(key, in_ch, out_ch):
    """Deterministic parameters matching nn.Conv2d shapes (OIHW weights)."""
    k1, k2, k3, k4 = jax.random.split(key, 4)
    fan1 = in_ch * 9
    fan2 = out_ch * 9
    w1 = jax.random.normal(k1, (out_ch, in_ch, 3, 3), jnp.float32) * (1.0 / fan1) ** 0.5
    b1 = jax.random.normal(k2, (out_ch,), jnp.float32) * 0.01
    w2 = jax.random.normal(k3, (out_ch, out_ch, 3, 3), jnp.float32) * (1.0 / fan2) ** 0.5
    b2 = jax.random.normal(k4, (out_ch,), jnp.float32) * 0.01
    return {"w1": w1, "b1": b1, "w2": w2, "b2": b2}


def _reference_forward(x_nchw, params):
    """Pure-JAX reference (lax conv, NCHW/OIHW) for correctness checking."""
    def conv(x, w, b):
        y = jax.lax.conv_general_dilated(
            x, w, window_strides=(1, 1), padding="SAME",
            dimension_numbers=("NCHW", "OIHW", "NCHW"))
        return jnp.maximum(y + b.reshape(1, -1, 1, 1), 0.0)
    x = conv(x_nchw, params["w1"], params["b1"])
    x = conv(x, params["w2"], params["b2"])
    return x


if __name__ == "__main__":
    key = jax.random.PRNGKey(0)
    k_x, k_p = jax.random.split(key)

    N, in_ch, out_ch, H, W = 2, 4, 8, 16, 16
    x = jax.random.normal(k_x, (N, in_ch, H, W), jnp.float32)   # NCHW, like PyTorch
    params = init_block_params(k_p, in_ch, out_ch)

    out = jax.block_until_ready(block_forward(x, params))
    assert out.shape == (N, out_ch, H, W), out.shape

    ref = jax.block_until_ready(_reference_forward(x, params))
    assert jnp.allclose(out, ref, atol=1e-4, rtol=1e-4), "mismatch vs reference"

    print("KERNEL_OK")
</pallas_src>

<mosaic_0001>
module attributes {stable_mosaic.version = 11 : i64} {
  func.func @kernel(%arg0: i32, %arg1: memref<1x4x256xf32, #tpu.memory_space<vmem>>, %arg2: memref<9x8x4xf32, #tpu.memory_space<vmem>>, %arg3: memref<8x1xf32, #tpu.memory_space<vmem>>, %arg4: memref<9x8x8xf32, #tpu.memory_space<vmem>>, %arg5: memref<8x1xf32, #tpu.memory_space<vmem>>, %arg6: memref<1x8x256xf32, #tpu.memory_space<vmem>>, %arg7: memref<4x290xf32, #tpu.memory_space<vmem>>, %arg8: memref<8x290xf32, #tpu.memory_space<vmem>>) attributes {dimension_semantics = [#tpu.dimension_semantics<parallel>], iteration_bounds = array<i64: 2>, scalar_prefetch = 0 : i64, scratch_operands = 2 : i64, tpu.core_type = #tpu.core_type<tc>, window_params = [{transform_indices = @transform_0, window_bounds = array<i64: 1, 4, 256>}, {pipeline_mode = #tpu.pipeline_mode<synchronous>, transform_indices = @transform_1, window_bounds = array<i64: 9, 8, 4>}, {pipeline_mode = #tpu.pipeline_mode<synchronous>, transform_indices = @transform_2, window_bounds = array<i64: 8, 1>}, {pipeline_mode = #tpu.pipeline_mode<synchronous>, transform_indices = @transform_3, window_bounds = array<i64: 9, 8, 8>}, {pipeline_mode = #tpu.pipeline_mode<synchronous>, transform_indices = @transform_4, window_bounds = array<i64: 8, 1>}, {transform_indices = @transform_5, window_bounds = array<i64: 1, 8, 256>}]} {
    %0 = tpu.iota {dimensions = array<i32: 1>} : vector<1x256xi32>
    %c16_i32 = arith.constant 16 : i32
    %c0_i32 = arith.constant 0 : i32
    %1 = arith.cmpi eq, %c16_i32, %c0_i32 : i32
    %c1_i32 = arith.constant 1 : i32
    %2 = arith.select %1, %c1_i32, %c16_i32 : i32
    %3 = vector.broadcast %2 : i32 to vector<1x256xi32>
    %4 = arith.remsi %0, %3 : vector<1x256xi32>
    %c0_i32_0 = arith.constant 0 : i32
    %5 = vector.broadcast %c0_i32_0 : i32 to vector<1x256xi32>
    %6 = arith.cmpi ne, %4, %5 : vector<1x256xi32>
    %c0_i32_1 = arith.constant 0 : i32
    %7 = vector.broadcast %c0_i32_1 : i32 to vector<1x256xi32>
    %8 = arith.cmpi slt, %4, %7 : vector<1x256xi32>
    %c0_i32_2 = arith.constant 0 : i32
    %9 = arith.cmpi slt, %2, %c0_i32_2 : i32
    %10 = vector.broadcast %9 : i1 to vector<1x256xi1>
    %11 = vector.broadcast %10 : vector<1x256xi1> to vector<1x256xi1>
    %12 = arith.xori %8, %11 : vector<1x256xi1>
    %13 = arith.andi %12, %6 : vector<1x256xi1>
    %14 = vector.broadcast %2 : i32 to vector<1x256xi32>
    %15 = arith.addi %4, %14 : vector<1x256xi32>
    %16 = arith.select %13, %15, %4 : vector<1x256xi1>, vector<1x256xi32>
    %c1_i32_3 = arith.constant 1 : i32
    %17 = vector.broadcast %c1_i32_3 : i32 to vector<1x256xi32>
    %18 = arith.cmpi sge, %16, %17 : vector<1x256xi32>
    %c14_i32 = arith.constant 14 : i32
    %19 = vector.broadcast %c14_i32 : i32 to vector<1x256xi32>
    %20 = arith.cmpi sle, %16, %19 : vector<1x256xi32>
    %c0 = arith.constant 0 : index
    %c0_4 = arith.constant 0 : index
    %c0_5 = arith.constant 0 : index
    %21 = vector.load %arg1[%c0, %c0_4, %c0_5] : memref<1x4x256xf32, #tpu.memory_space<vmem>>, vector<1x4x256xf32>
    %22 = vector.shape_cast %21 : vector<1x4x256xf32> to vector<4x256xf32>
    %cst = arith.constant 0.000000e+00 : f32
    %23 = vector.broadcast %cst : f32 to vector<4x17xf32>
    %c0_6 = arith.constant 0 : index
    %c0_7 = arith.constant 0 : index
    %24 = vector.load %arg7[%c0_6, %c0_7] : memref<4x290xf32, #tpu.memory_space<vmem>>, vector<4x17xf32>
    tpu.vector_store %arg7[%c0_6, %c0_7], %23 {strides = array<i32>} : memref<4x290xf32, #tpu.memory_space<vmem>>, vector<4x17xf32>,
    %cst_8 = arith.constant 0.000000e+00 : f32
    %25 = vector.broadcast %cst_8 : f32 to vector<4x17xf32>
    %c0_9 = arith.constant 0 : index
    %c273 = arith.constant 273 : index
    %26 = vector.load %arg7[%c0_9, %c273] : memref<4x290xf32, #tpu.memory_space<vmem>>, vector<4x17xf32>
    tpu.vector_store %arg7[%c0_9, %c273], %25 {strides = array<i32>} : memref<4x290xf32, #tpu.memory_space<vmem>>, vector<4x17xf32>,
    %c0_10 = arith.constant 0 : index
    %c17 = arith.constant 17 : index
    %27 = vector.load %arg7[%c0_10, %c17] : memref<4x290xf32, #tpu.memory_space<vmem>>, vector<4x256xf32>
    tpu.vector_store %arg7[%c0_10, %c17], %22 {strides = array<i32>} : memref<4x290xf32, #tpu.memory_space<vmem>>, vector<4x256xf32>,
    %cst_11 = arith.constant 0.000000e+00 : f32
    %28 = vector.broadcast %cst_11 : f32 to vector<8x256xf32>
    %c0_12 = arith.constant 0 : index
    %c0_13 = arith.constant 0 : index
    %29 = vector.load %arg7[%c0_12, %c0_13] : memref<4x290xf32, #tpu.memory_space<vmem>>, vector<4x256xf32>
    %cst_14 = arith.constant 0.000000e+00 : f32
    %30 = vector.shape_cast %18 : vector<1x256xi1> to vector<1x256xi1>
    %31 = vector.broadcast %30 : vector<1x256xi1> to vector<4x256xi1>
    %32 = vector.broadcast %cst_14 : f32 to vector<4x256xf32>
    %33 = arith.select %31, %29, %32 : vector<4x256xi1>, vector<4x256xf32>
    %c0_15 = arith.constant 0 : index
    %c0_16 = arith.constant 0 : index
    %c0_17 = arith.constant 0 : index
    %34 = vector.load %arg2[%c0_15, %c0_16, %c0_17] : memref<9x8x4xf32, #tpu.memory_space<vmem>>, vector<1x8x4xf32>
    %35 = vector.shape_cast %34 : vector<1x8x4xf32> to vector<8x4xf32>
    %cst_18 = arith.constant dense<0.000000e+00> : vector<8x256xf32>
    %36 = tpu.matmul %35, %33, %cst_18 {dimension_numbers = #tpu.dot_dimension_numbers<[1], [0], [0], [1], [0, 0, 1, 1], [], []>} : vector<8x4xf32>, vector<4x256xf32>, vector<8x256xf32> -> vector<8x256xf32>
    %37 = arith.addf %28, %36 : vector<8x256xf32>
    %c0_19 = arith.constant 0 : index
    %c1 = arith.constant 1 : index
    %38 = vector.load %arg7[%c0_19, %c1] : memref<4x290xf32, #tpu.memory_space<vmem>>, vector<4x256xf32>
    %c1_20 = arith.constant 1 : index
    %c0_21 = arith.constant 0 : index
    %c0_22 = arith.constant 0 : index
    %39 = vector.load %arg2[%c1_20, %c0_21, %c0_22] : memref<9x8x4xf32, #tpu.memory_space<vmem>>, vector<1x8x4xf32>
    %40 = vector.shape_cast %39 : vector<1x8x4xf32> to vector<8x4xf32>
    %cst_23 = arith.constant dense<0.000000e+00> : vector<8x256xf32>
    %41 = tpu.matmul %40, %38, %cst_23 {dimension_numbers = #tpu.dot_dimension_numbers<[1], [0], [0], [1], [0, 0, 1, 1], [], []>} : vector<8x4xf32>, vector<4x256xf32>, vector<8x256xf32> -> vector<8x256xf32>
    %42 = arith.addf %37, %41 : vector<8x256xf32>
    %c0_24 = arith.constant 0 : index
    %c2 = arith.constant 2 : index
    %43 = vector.load %arg7[%c0_24, %c2] : memref<4x290xf32, #tpu.memory_space<vmem>>, vector<4x256xf32>
    %cst_25 = arith.constant 0.000000e+00 : f32
    %44 = vector.shape_cast %20 : vector<1x256xi1> to vector<1x256xi1>
    %45 = vector.broadcast %44 : vector<1x256xi1> to vector<4x256xi1>
    %46 = vector.broadcast %cst_25 : f32 to vector<4x256xf32>
    %47 = arith.select %45, %43, %46 : vector<4x256xi1>, vector<4x256xf32>
    %c2_26 = arith.constant 2 : index
    %c0_27 = arith.constant 0 : index
    %c0_28 = arith.constant 0 : index
    %48 = vector.load %arg2[%c2_26, %c0_27, %c0_28] : memref<9x8x4xf32, #tpu.memory_space<vmem>>, vector<1x8x4xf32>
    %49 = vector.shape_cast %48 : vector<1x8x4xf32> to vector<8x4xf32>
    %cst_29 = arith.constant dense<0.000000e+00> : vector<8x256xf32>
    %50 = tpu.matmul %49, %47, %cst_29 {dimension_numbers = #tpu.dot_dimension_numbers<[1], [0], [0], [1], [0, 0, 1, 1], [], []>} : vector<8x4xf32>, vector<4x256xf32>, vector<8x256xf32> -> vector<8x256xf32>
    %51 = arith.addf %42, %50 : vector<8x256xf32>
    %c0_30 = arith.constant 0 : index
    %c16 = arith.constant 16 : index
    %52 = vector.load %arg7[%c0_30, %c16] : memref<4x290xf32, #tpu.memory_space<vmem>>, vector<4x256xf32>
    %cst_31 = arith.constant 0.000000e+00 : f32
    %53 = vector.shape_cast %18 : vector<1x256xi1> to vector<1x256xi1>
    %54 = vector.broadcast %53 : vector<1x256xi1> to vector<4x256xi1>
    %55 = vector.broadcast %cst_31 : f32 to vector<4x256xf32>
    %56 = arith.select %54, %52, %55 : vector<4x256xi1>, vector<4x256xf32>
    %c3 = arith.constant 3 : index
    %c0_32 = arith.constant 0 : index
    %c0_33 = arith.constant 0 : index
    %57 = vector.load %arg2[%c3, %c0_32, %c0_33] : memref<9x8x4xf32, #tpu.memory_space<vmem>>, vector<1x8x4xf32>
    %58 = vector.shape_cast %57 : vector<1x8x4xf32> to vector<8x4xf32>
    %cst_34 = arith.constant dense<0.000000e+00> : vector<8x256xf32>
    %59 = tpu.matmul %58, %56, %cst_34 {dimension_numbers = #tpu.dot_dimension_numbers<[1], [0], [0], [1], [0, 0, 1, 1], [], []>} : vector<8x4xf32>, vector<4x256xf32>, vector<8x256xf32> -> vector<8x256xf32>
    %60 = arith.addf %51, %59 : vector<8x256xf32>
    %c0_35 = arith.constant 0 : index
    %c17_36 = arith.constant 17 : index
    %61 = vector.load %arg7[%c0_35, %c17_36] : memref<4x290xf32, #tpu.memory_space<vmem>>, vector<4x256xf32>
    %c4 = arith.constant 4 : index
    %c0_37 = arith.constant 0 : index
    %c0_38 = arith.constant 0 : index
    %62 = vector.load %arg2[%c4, %c0_37, %c0_38] : memref<9x8x4xf32, #tpu.memory_space<vmem>>, vector<1x8x4xf32>
    %63 = vector.shape_cast %62 : vector<1x8x4xf32> to vector<8x4xf32>
    %cst_39 = arith.constant dense<0.000000e+00> : vector<8x256xf32>
    %64 = tpu.matmul %63, %61, %cst_39 {dimension_numbers = #tpu.dot_dimension_numbers<[1], [0], [0], [1], [0, 0, 1, 1], [], []>} : vector<8x4xf32>, vector<4x256xf32>, vector<8x256xf32> -> vector<8x256xf32>
    %65 = arith.addf %60, %64 : vector<8x256xf32>
    %c0_40 = arith.constant 0 : index
    %c18 = arith.constant 18 : index
    %66 = vector.load %arg7[%c0_40, %c18] : memref<4x290xf32, #tpu.memory_space<vmem>>, vector<4x256xf32>
    %cst_41 = arith.constant 0.000000e+00 : f32
    %67 = vector.shape_cast %20 : vector<1x256xi1> to vector<1x256xi1>
    %68 = vector.broadcast %67 : vector<1x256xi1> to vector<4x256xi1>
    %69 = vector.broadcast %cst_41 : f32 to vector<4x256xf32>
    %70 = arith.select %68, %66, %69 : vector<4x256xi1>, vector<4x256xf32>
    %c5 = arith.constant 5 : index
    %c0_42 = arith.constant 0 : index
    %c0_43 = arith.constant 0 : index
    %71 = vector.load %arg2[%c5, %c0_42, %c0_43] : memref<9x8x4xf32, #tpu.memory_space<vmem>>, vector<1x8x4xf32>
    %72 = vector.shape_cast %71 : vector<1x8x4xf32> to vector<8x4xf32>
    %cst_44 = arith.constant dense<0.000000e+00> : vector<8x256xf32>
    %73 = tpu.matmul %72, %70, %cst_44 {dimension_numbers = #tpu.dot_dimension_numbers<[1], [0], [0], [1], [0, 0, 1, 1], [], []>} : vector<8x4xf32>, vector<4x256xf32>, vector<8x256xf32> -> vector<8x256xf32>
    %74 = arith.addf %65, %73 : vector<8x256xf32>
    %c0_45 = arith.constant 0 : index
    %c32 = arith.constant 32 : index
    %75 = vector.load %arg7[%c0_45, %c32] : memref<4x290xf32, #tpu.memory_space<vmem>>, vector<4x256xf32>
    %cst_46 = arith.constant 0.000000e+00 : f32
    %76 = vector.shape_cast %18 : vector<1x256xi1> to vector<1x256xi1>
    %77 = vector.broadcast %76 : vector<1x256xi1> to vector<4x256xi1>
    %78 = vector.broadcast %cst_46 : f32 to vector<4x256xf32>
    %79 = arith.select %77, %75, %78 : vector<4x256xi1>, vector<4x256xf32>
    %c6 = arith.constant 6 : index
    %c0_47 = arith.constant 0 : index
    %c0_48 = arith.constant 0 : index
    %80 = vector.load %arg2[%c6, %c0_47, %c0_48] : memref<9x8x4xf32, #tpu.memory_space<vmem>>, vector<1x8x4xf32>
    %81 = vector.shape_cast %80 : vector<1x8x4xf32> to vector<8x4xf32>
    %cst_49 = arith.constant dense<0.000000e+00> : vector<8x256xf32>
    %82 = tpu.matmul %81, %79, %cst_49 {dimension_numbers = #tpu.dot_dimension_numbers<[1], [0], [0], [1], [0, 0, 1, 1], [], []>} : vector<8x4xf32>, vector<4x256xf32>, vector<8x256xf32> -> vector<8x256xf32>
    %83 = arith.addf %74, %82 : vector<8x256xf32>
    %c0_50 = arith.constant 0 : index
    %c33 = arith.constant 33 : index
    %84 = vector.load %arg7[%c0_50, %c33] : memref<4x290xf32, #tpu.memory_space<vmem>>, vector<4x256xf32>
    %c7 = arith.constant 7 : index
    %c0_51 = arith.constant 0 : index
    %c0_52 = arith.constant 0 : index
    %85 = vector.load %arg2[%c7, %c0_51, %c0_52] : memref<9x8x4xf32, #tpu.memory_space<vmem>>, vector<1x8x4xf32>
    %86 = vector.shape_cast %85 : vector<1x8x4xf32> to vector<8x4xf32>
    %cst_53 = arith.constant dense<0.000000e+00> : vector<8x256xf32>
    %87 = tpu.matmul %86, %84, %cst_53 {dimension_numbers = #tpu.dot_dimension_numbers<[1], [0], [0], [1], [0, 0, 1, 1], [], []>} : vector<8x4xf32>, vector<4x256xf32>, vector<8x256xf32> -> vector<8x256xf32>
    %88 = arith.addf %83, %87 : vector<8x256xf32>
    %c0_54 = arith.constant 0 : index
    %c34 = arith.constant 34 : index
    %89 = vector.load %arg7[%c0_54, %c34] : memref<4x290xf32, #tpu.memory_space<vmem>>, vector<4x256xf32>
    %cst_55 = arith.constant 0.000000e+00 : f32
    %90 = vector.shape_cast %20 : vector<1x256xi1> to vector<1x256xi1>
    %91 = vector.broadcast %90 : vector<1x256xi1> to vector<4x256xi1>
    %92 = vector.broadcast %cst_55 : f32 to vector<4x256xf32>
    %93 = arith.select %91, %89, %92 : vector<4x256xi1>, vector<4x256xf32>
    %c8 = arith.constant 8 : index
    %c0_56 = arith.constant 0 : index
    %c0_57 = arith.constant 0 : index
    %94 = vector.load %arg2[%c8, %c0_56, %c0_57] : memref<9x8x4xf32, #tpu.memory_space<vmem>>, vector<1x8x4xf32>
    %95 = vector.shape_cast %94 : vector<1x8x4xf32> to vector<8x4xf32>
    %cst_58 = arith.constant dense<0.000000e+00> : vector<8x256xf32>
    %96 = tpu.matmul %95, %93, %cst_58 {dimension_numbers = #tpu.dot_dimension_numbers<[1], [0], [0], [1], [0, 0, 1, 1], [], []>} : vector<8x4xf32>, vector<4x256xf32>, vector<8x256xf32> -> vector<8x256xf32>
    %97 = arith.addf %88, %96 : vector<8x256xf32>
    %c0_59 = arith.constant 0 : index
    %c0_60 = arith.constant 0 : index
    %98 = vector.load %arg3[%c0_59, %c0_60] : memref<8x1xf32, #tpu.memory_space<vmem>>, vector<8x1xf32>
    %99 = vector.broadcast %98 : vector<8x1xf32> to vector<8x256xf32>
    %100 = arith.addf %97, %99 : vector<8x256xf32>
    %cst_61 = arith.constant 0.000000e+00 : f32
    %101 = vector.broadcast %cst_61 : f32 to vector<8x256xf32>
    %102 = arith.maximumf %100, %101 : vector<8x256xf32>
    %cst_62 = arith.constant 0.000000e+00 : f32
    %103 = vector.broadcast %cst_62 : f32 to vector<8x17xf32>
    %c0_63 = arith.constant 0 : index
    %c0_64 = arith.constant 0 : index
    %104 = vector.load %arg8[%c0_63, %c0_64] : memref<8x290xf32, #tpu.memory_space<vmem>>, vector<8x17xf32>
    tpu.vector_store %arg8[%c0_63, %c0_64], %103 {strides = array<i32>} : memref<8x290xf32, #tpu.memory_space<vmem>>, vector<8x17xf32>,
    %cst_65 = arith.constant 0.000000e+00 : f32
    %105 = vector.broadcast %cst_65 : f32 to vector<8x17xf32>
    %c0_66 = arith.constant 0 : index
    %c273_67 = arith.constant 273 : index
    %106 = vector.load %arg8[%c0_66, %c273_67] : memref<8x290xf32, #tpu.memory_space<vmem>>, vector<8x17xf32>
    tpu.vector_store %arg8[%c0_66, %c273_67], %105 {strides = array<i32>} : memref<8x290xf32, #tpu.memory_space<vmem>>, vector<8x17xf32>,
    %c0_68 = arith.constant 0 : index
    %c17_69 = arith.constant 17 : index
    %107 = vector.load %arg8[%c0_68, %c17_69] : memref<8x290xf32, #tpu.memory_space<vmem>>, vector<8x256xf32>
    tpu.vector_store %arg8[%c0_68, %c17_69], %102 {strides = array<i32>} : memref<8x290xf32, #tpu.memory_space<vmem>>, vector<8x256xf32>,
    %cst_70 = arith.constant 0.000000e+00 : f32
    %108 = vector.broadcast %cst_70 : f32 to vector<8x256xf32>
    %c0_71 = arith.constant 0 : index
    %c0_72 = arith.constant 0 : index
    %109 = vector.load %arg8[%c0_71, %c0_72] : memref<8x290xf32, #tpu.memory_space<vmem>>, vector<8x256xf32>
    %cst_73 = arith.constant 0.000000e+00 : f32
    %110 = vector.shape_cast %18 : vector<1x256xi1> to vector<1x256xi1>
    %111 = vector.broadcast %110 : vector<1x256xi1> to vector<8x256xi1>
    %112 = vector.broadcast %cst_73 : f32 to vector<8x256xf32>
    %113 = arith.select %111, %109, %112 : vector<8x256xi1>, vector<8x256xf32>
    %c0_74 = arith.constant 0 : index
    %c0_75 = arith.constant 0 : index
    %c0_76 = arith.constant 0 : index
    %114 = vector.load %arg4[%c0_74, %c0_75, %c0_76] : memref<9x8x8xf32, #tpu.memory_space<vmem>>, vector<1x8x8xf32>
    %115 = vector.shape_cast %114 : vector<1x8x8xf32> to vector<8x8xf32>
    %cst_77 = arith.constant dense<0.000000e+00> : vector<8x256xf32>
    %116 = tpu.matmul %115, %113, %cst_77 {dimension_numbers = #tpu.dot_dimension_numbers<[1], [0], [0], [1], [0, 0, 1, 1], [], []>} : vector<8x8xf32>, vector<8x256xf32>, vector<8x256xf32> -> vector<8x256xf32>
    %117 = arith.addf %108, %116 : vector<8x256xf32>
    %c0_78 = arith.constant 0 : index
    %c1_79 = arith.constant 1 : index
    %118 = vector.load %arg8[%c0_78, %c1_79] : memref<8x290xf32, #tpu.memory_space<vmem>>, vector<8x256xf32>
    %c1_80 = arith.constant 1 : index
    %c0_81 = arith.constant 0 : index
    %c0_82 = arith.constant 0 : index
    %119 = vector.load %arg4[%c1_80, %c0_81, %c0_82] : memref<9x8x8xf32, #tpu.memory_space<vmem>>, vector<1x8x8xf32>
    %120 = vector.shape_cast %119 : vector<1x8x8xf32> to vector<8x8xf32>
    %cst_83 = arith.constant dense<0.000000e+00> : vector<8x256xf32>
    %121 = tpu.matmul %120, %118, %cst_83 {dimension_numbers = #tpu.dot_dimension_numbers<[1], [0], [0], [1], [0, 0, 1, 1], [], []>} : vector<8x8xf32>, vector<8x256xf32>, vector<8x256xf32> -> vector<8x256xf32>
    %122 = arith.addf %117, %121 : vector<8x256xf32>
    %c0_84 = arith.constant 0 : index
    %c2_85 = arith.constant 2 : index
    %123 = vector.load %arg8[%c0_84, %c2_85] : memref<8x290xf32, #tpu.memory_space<vmem>>, vector<8x256xf32>
    %cst_86 = arith.constant 0.000000e+00 : f32
    %124 = vector.shape_cast %20 : vector<1x256xi1> to vector<1x256xi1>
    %125 = vector.broadcast %124 : vector<1x256xi1> to vector<8x256xi1>
    %126 = vector.broadcast %cst_86 : f32 to vector<8x256xf32>
    %127 = arith.select %125, %123, %126 : vector<8x256xi1>, vector<8x256xf32>
    %c2_87 = arith.constant 2 : index
    %c0_88 = arith.constant 0 : index
    %c0_89 = arith.constant 0 : index
    %128 = vector.load %arg4[%c2_87, %c0_88, %c0_89] : memref<9x8x8xf32, #tpu.memory_space<vmem>>, vector<1x8x8xf32>
    %129 = vector.shape_cast %128 : vector<1x8x8xf32> to vector<8x8xf32>
    %cst_90 = arith.constant dense<0.000000e+00> : vector<8x256xf32>
    %130 = tpu.matmul %129, %127, %cst_90 {dimension_numbers = #tpu.dot_dimension_numbers<[1], [0], [0], [1], [0, 0, 1, 1], [], []>} : vector<8x8xf32>, vector<8x256xf32>, vector<8x256xf32> -> vector<8x256xf32>
    %131 = arith.addf %122, %130 : vector<8x256xf32>
    %c0_91 = arith.constant 0 : index
    %c16_92 = arith.constant 16 : index
    %132 = vector.load %arg8[%c0_91, %c16_92] : memref<8x290xf32, #tpu.memory_space<vmem>>, vector<8x256xf32>
    %cst_93 = arith.constant 0.000000e+00 : f32
    %133 = vector.shape_cast %18 : vector<1x256xi1> to vector<1x256xi1>
    %134 = vector.broadcast %133 : vector<1x256xi1> to vector<8x256xi1>
    %135 = vector.broadcast %cst_93 : f32 to vector<8x256xf32>
    %136 = arith.select %134, %132, %135 : vector<8x256xi1>, vector<8x256xf32>
    %c3_94 = arith.constant 3 : index
    %c0_95 = arith.constant 0 : index
    %c0_96 = arith.constant 0 : index
    %137 = vector.load %arg4[%c3_94, %c0_95, %c0_96] : memref<9x8x8xf32, #tpu.memory_space<vmem>>, vector<1x8x8xf32>
    %138 = vector.shape_cast %137 : vector<1x8x8xf32> to vector<8x8xf32>
    %cst_97 = arith.constant dense<0.000000e+00> : vector<8x256xf32>
    %139 = tpu.matmul %138, %136, %cst_97 {dimension_numbers = #tpu.dot_dimension_numbers<[1], [0], [0], [1], [0, 0, 1, 1], [], []>} : vector<8x8xf32>, vector<8x256xf32>, vector<8x256xf32> -> vector<8x256xf32>
    %140 = arith.addf %131, %139 : vector<8x256xf32>
    %c0_98 = arith.constant 0 : index
    %c17_99 = arith.constant 17 : index
    %141 = vector.load %arg8[%c0_98, %c17_99] : memref<8x290xf32, #tpu.memory_space<vmem>>, vector<8x256xf32>
    %c4_100 = arith.constant 4 : index
    %c0_101 = arith.constant 0 : index
    %c0_102 = arith.constant 0 : index
    %142 = vector.load %arg4[%c4_100, %c0_101, %c0_102] : memref<9x8x8xf32, #tpu.memory_space<vmem>>, vector<1x8x8xf32>
    %143 = vector.shape_cast %142 : vector<1x8x8xf32> to vector<8x8xf32>
    %cst_103 = arith.constant dense<0.000000e+00> : vector<8x256xf32>
    %144 = tpu.matmul %143, %141, %cst_103 {dimension_numbers = #tpu.dot_dimension_numbers<[1], [0], [0], [1], [0, 0, 1, 1], [], []>} : vector<8x8xf32>, vector<8x256xf32>, vector<8x256xf32> -> vector<8x256xf32>
    %145 = arith.addf %140, %144 : vector<8x256xf32>
    %c0_104 = arith.constant 0 : index
    %c18_105 = arith.constant 18 : index
    %146 = vector.load %arg8[%c0_104, %c18_105] : memref<8x290xf32, #tpu.memory_space<vmem>>, vector<8x256xf32>
    %cst_106 = arith.constant 0.000000e+00 : f32
    %147 = vector.shape_cast %20 : vector<1x256xi1> to vector<1x256xi1>
    %148 = vector.broadcast %147 : vector<1x256xi1> to vector<8x256xi1>
    %149 = vector.broadcast %cst_106 : f32 to vector<8x256xf32>
    %150 = arith.select %148, %146, %149 : vector<8x256xi1>, vector<8x256xf32>
    %c5_107 = arith.constant 5 : index
    %c0_108 = arith.constant 0 : index
    %c0_109 = arith.constant 0 : index
    %151 = vector.load %arg4[%c5_107, %c0_108, %c0_109] : memref<9x8x8xf32, #tpu.memory_space<vmem>>, vector<1x8x8xf32>
    %152 = vector.shape_cast %151 : vector<1x8x8xf32> to vector<8x8xf32>
    %cst_110 = arith.constant dense<0.000000e+00> : vector<8x256xf32>
    %153 = tpu.matmul %152, %150, %cst_110 {dimension_numbers = #tpu.dot_dimension_numbers<[1], [0], [0], [1], [0, 0, 1, 1], [], []>} : vector<8x8xf32>, vector<8x256xf32>, vector<8x256xf32> -> vector<8x256xf32>
    %154 = arith.addf %145, %153 : vector<8x256xf32>
    %c0_111 = arith.constant 0 : index
    %c32_112 = arith.constant 32 : index
    %155 = vector.load %arg8[%c0_111, %c32_112] : memref<8x290xf32, #tpu.memory_space<vmem>>, vector<8x256xf32>
    %cst_113 = arith.constant 0.000000e+00 : f32
    %156 = vector.shape_cast %18 : vector<1x256xi1> to vector<1x256xi1>
    %157 = vector.broadcast %156 : vector<1x256xi1> to vector<8x256xi1>
    %158 = vector.broadcast %cst_113 : f32 to vector<8x256xf32>
    %159 = arith.select %157, %155, %158 : vector<8x256xi1>, vector<8x256xf32>
    %c6_114 = arith.constant 6 : index
    %c0_115 = arith.constant 0 : index
    %c0_116 = arith.constant 0 : index
    %160 = vector.load %arg4[%c6_114, %c0_115, %c0_116] : memref<9x8x8xf32, #tpu.memory_space<vmem>>, vector<1x8x8xf32>
    %161 = vector.shape_cast %160 : vector<1x8x8xf32> to vector<8x8xf32>
    %cst_117 = arith.constant dense<0.000000e+00> : vector<8x256xf32>
    %162 = tpu.matmul %161, %159, %cst_117 {dimension_numbers = #tpu.dot_dimension_numbers<[1], [0], [0], [1], [0, 0, 1, 1], [], []>} : vector<8x8xf32>, vector<8x256xf32>, vector<8x256xf32> -> vector<8x256xf32>
    %163 = arith.addf %154, %162 : vector<8x256xf32>
    %c0_118 = arith.constant 0 : index
    %c33_119 = arith.constant 33 : index
    %164 = vector.load %arg8[%c0_118, %c33_119] : memref<8x290xf32, #tpu.memory_space<vmem>>, vector<8x256xf32>
    %c7_120 = arith.constant 7 : index
    %c0_121 = arith.constant 0 : index
    %c0_122 = arith.constant 0 : index
    %165 = vector.load %arg4[%c7_120, %c0_121, %c0_122] : memref<9x8x8xf32, #tpu.memory_space<vmem>>, vector<1x8x8xf32>
    %166 = vector.shape_cast %165 : vector<1x8x8xf32> to vector<8x8xf32>
    %cst_123 = arith.constant dense<0.000000e+00> : vector<8x256xf32>
    %167 = tpu.matmul %166, %164, %cst_123 {dimension_numbers = #tpu.dot_dimension_numbers<[1], [0], [0], [1], [0, 0, 1, 1], [], []>} : vector<8x8xf32>, vector<8x256xf32>, vector<8x256xf32> -> vector<8x256xf32>
    %168 = arith.addf %163, %167 : vector<8x256xf32>
    %c0_124 = arith.constant 0 : index
    %c34_125 = arith.constant 34 : index
    %169 = vector.load %arg8[%c0_124, %c34_125] : memref<8x290xf32, #tpu.memory_space<vmem>>, vector<8x256xf32>
    %cst_126 = arith.constant 0.000000e+00 : f32
    %170 = vector.shape_cast %20 : vector<1x256xi1> to vector<1x256xi1>
    %171 = vector.broadcast %170 : vector<1x256xi1> to vector<8x256xi1>
    %172 = vector.broadcast %cst_126 : f32 to vector<8x256xf32>
    %173 = arith.select %171, %169, %172 : vector<8x256xi1>, vector<8x256xf32>
    %c8_127 = arith.constant 8 : index
    %c0_128 = arith.constant 0 : index
    %c0_129 = arith.constant 0 : index
    %174 = vector.load %arg4[%c8_127, %c0_128, %c0_129] : memref<9x8x8xf32, #tpu.memory_space<vmem>>, vector<1x8x8xf32>
    %175 = vector.shape_cast %174 : vector<1x8x8xf32> to vector<8x8xf32>
    %cst_130 = arith.constant dense<0.000000e+00> : vector<8x256xf32>
    %176 = tpu.matmul %175, %173, %cst_130 {dimension_numbers = #tpu.dot_dimension_numbers<[1], [0], [0], [1], [0, 0, 1, 1], [], []>} : vector<8x8xf32>, vector<8x256xf32>, vector<8x256xf32> -> vector<8x256xf32>
    %177 = arith.addf %168, %176 : vector<8x256xf32>
    %c0_131 = arith.constant 0 : index
    %c0_132 = arith.constant 0 : index
    %178 = vector.load %arg5[%c0_131, %c0_132] : memref<8x1xf32, #tpu.memory_space<vmem>>, vector<8x1xf32>
    %179 = vector.broadcast %178 : vector<8x1xf32> to vector<8x256xf32>
    %180 = arith.addf %177, %179 : vector<8x256xf32>
    %cst_133 = arith.constant 0.000000e+00 : f32
    %181 = vector.broadcast %cst_133 : f32 to vector<8x256xf32>
    %182 = arith.maximumf %180, %181 : vector<8x256xf32>
    %c0_134 = arith.constant 0 : index
    %c0_135 = arith.constant 0 : index
    %c0_136 = arith.constant 0 : index
    %183 = vector.load %arg6[%c0_134, %c0_135, %c0_136] : memref<1x8x256xf32, #tpu.memory_space<vmem>>, vector<1x8x256xf32>
    %184 = vector.shape_cast %183 : vector<1x8x256xf32> to vector<8x256xf32>
    %185 = vector.shape_cast %182 : vector<8x256xf32> to vector<1x8x256xf32>
    tpu.vector_store %arg6[%c0_134, %c0_135, %c0_136], %185 {strides = array<i32>} : memref<1x8x256xf32, #tpu.memory_space<vmem>>, vector<1x8x256xf32>,
    return
  }
  func.func @transform_0(%arg0: i32) -> (i32, i32, i32) {
    %c0_i32 = arith.constant 0 : i32
    %c0_i32_0 = arith.constant 0 : i32
    %c0_i32_1 = arith.constant 0 : i32
    return %arg0, %c0_i32, %c0_i32_0 : i32, i32, i32
  }
  func.func @transform_1(%arg0: i32) -> (i32, i32, i32) {
    %c0_i32 = arith.constant 0 : i32
    %c0_i32_0 = arith.constant 0 : i32
    %c0_i32_1 = arith.constant 0 : i32
    %c0_i32_2 = arith.constant 0 : i32
    return %c0_i32, %c0_i32_0, %c0_i32_1 : i32, i32, i32
  }
  func.func @transform_2(%arg0: i32) -> (i32, i32) {
    %c0_i32 = arith.constant 0 : i32
    %c0_i32_0 = arith.constant 0 : i32
    %c0_i32_1 = arith.constant 0 : i32
    return %c0_i32, %c0_i32_0 : i32, i32
  }
  func.func @transform_3(%arg0: i32) -> (i32, i32, i32) {
    %c0_i32 = arith.constant 0 : i32
    %c0_i32_0 = arith.constant 0 : i32
    %c0_i32_1 = arith.constant 0 : i32
    %c0_i32_2 = arith.constant 0 : i32
    return %c0_i32, %c0_i32_0, %c0_i32_1 : i32, i32, i32
  }
  func.func @transform_4(%arg0: i32) -> (i32, i32) {
    %c0_i32 = arith.constant 0 : i32
    %c0_i32_0 = arith.constant 0 : i32
    %c0_i32_1 = arith.constant 0 : i32
    return %c0_i32, %c0_i32_0 : i32, i32
  }
  func.func @transform_5(%arg0: i32) -> (i32, i32, i32) {
    %c0_i32 = arith.constant 0 : i32
    %c0_i32_0 = arith.constant 0 : i32
    %c0_i32_1 = arith.constant 0 : i32
    return %arg0, %c0_i32, %c0_i32_0 : i32, i32, i32
  }
}

</mosaic_0001>

<llo_original>
// kernel: block_forward.1
$region0: #{block_forward.1}
  #allocation0 [shape = 'u32[]', space=smem, size = 0x4, offset = 0x4, fixed_abs, tag = 'smem constant byte address 0x4 - core index']
  #allocation1 [shape = 'u32[144,128]{1,0:T(1,128)}', space=vmem, size = 0x12000, scoped, tag = 'internal scratch']
  #allocation2 [shape = 'f32[4,290]{1,0:T(4,128)}', space=vmem, size = 0x1800, scoped, tag = 'scratch operand']
  #allocation3 [shape = 'f32[8,290]{1,0:T(8,128)}', space=vmem, size = 0x3000, scoped, tag = 'scratch operand']
  %s0 = inlined_call_operand.vmem [shape: f32[2,4,256], index: 0, kind: input, shape index: {}]
  %s1 = inlined_call_operand.vmem [shape: f32[9,8,4], index: 1, kind: input, shape index: {}]
  %s2 = inlined_call_operand.vmem [shape: f32[8,1], index: 2, kind: input, shape index: {}]
  %s3 = inlined_call_operand.vmem [shape: f32[9,8,8], index: 3, kind: input, shape index: {}]
  %s4 = inlined_call_operand.vmem [shape: f32[8,1], index: 4, kind: input, shape index: {}]
  %s5 = inlined_call_operand.vmem [shape: f32[2,8,256], index: 5, kind: output, shape index: {}]
  %s6 = sld [smem:[#allocation0]]
  $region53: #{block_forward.1} parent=0
    _
  %s8 = ssub.s32 1, %s6
  %s9 = scalar_select 0, %s8, %s6
  loop: start=0, step=1, limit=4
  $region2: #{block_forward.1} parent=0 // loop_pre_header
    _
  $region3: #{block_forward.1} parent=0 // loop_header
    %s11 = sphi 0, %s15
    %p12 = scmp.ge.s32.totalorder %s11, 4
    %s21 = sphi 0, %s23
    %s24 = sphi 0, %s21
    %s25 = sphi 0, %s24
    %s41 = sphi 0, %s25
    %s45 = sphi 0, %s45
    %s47 = sphi 0, %s45
    %s48 = sphi 0, %s47
    %s62 = sphi 0, %s48
    %s66 = sphi 0, %s66
    %s68 = sphi 0, %s66
    %s69 = sphi 0, %s68
    %s83 = sphi 0, %s69
    %s87 = sphi 0, %s87
    %s89 = sphi 0, %s87
    %s90 = sphi 0, %s89
    %s104 = sphi 0, %s90
    %s108 = sphi 0, %s108
    %s110 = sphi 0, %s108
    %s111 = sphi 0, %s110
    %s125 = sphi 0, %s111
    %s131 = sphi 0, %s133
    %s134 = sphi 0, %s131
    %s135 = sphi 0, %s134
    %s151 = sphi 0, %s135
  $region4: #{block_forward.1} parent=0 // loop_header_branch
    %14 = sbr.rel (%p12) target = $region8
  $region5: #{block_forward.1} parent=0 // loop_body
    %s16 = ssub.s32 %s11, 1
    %s17 = ssub.s32 %s11, 2
    %s18 = sadd.s32 %s11, 1
    %s19 = ssub.s32 %s11, %s18
    %p20 = scmp.eq.s32.totalorder %s19, 0
    %s22 = sadd.s32 %s21, 1
    %s23 = scalar_select %p20, %s21, %s22
    %p26 = pneg %p20
    %p27 = scmp.eq.s32.totalorder %s11, 1
    %p28 = por %p26, %p27
    %p29 = scmp.ne.s32.totalorder %s21, %s24
    %p30 = scmp.eq.s32.totalorder %s11, 0
    %p31 = por %p29, %p30
    %p32 = scmp.ne.s32.totalorder %s21, %s24
    %p33 = scmp.eq.s32.totalorder %s16, 1
    %p34 = por %p32, %p33
    %p35 = scmp.ne.s32.totalorder %s24, %s25
    %p36 = scmp.eq.s32.totalorder %s16, 0
    %p37 = por %p35, %p36
    %p38 = scmp.ne.s32.totalorder %s24, %s25
    %p39 = scmp.eq.s32.totalorder %s17, 1
    %p40 = por %p38, %p39
    %p42 = scmp.ne.s32.totalorder %s25, %s41
    %p43 = scmp.eq.s32.totalorder %s17, 0
    %p44 = por %p42, %p43
    %s46 = sadd.s32 %s45, 1
    %p49 = scmp.eq.s32.totalorder %s11, 1
    %p50 = scmp.ne.s32.totalorder %s45, %s47
    %p51 = scmp.eq.s32.totalorder %s11, 0
    %p52 = por %p50, %p51
    %p53 = scmp.ne.s32.totalorder %s45, %s47
    %p54 = scmp.eq.s32.totalorder %s16, 1
    %p55 = por %p53, %p54
    %p56 = scmp.ne.s32.totalorder %s47, %s48
    %p57 = scmp.eq.s32.totalorder %s16, 0
    %p58 = por %p56, %p57
    %p59 = scmp.ne.s32.totalorder %s47, %s48
    %p60 = scmp.eq.s32.totalorder %s17, 1
    %p61 = por %p59, %p60
    %p63 = scmp.ne.s32.totalorder %s48, %s62
    %p64 = scmp.eq.s32.totalorder %s17, 0
    %p65 = por %p63, %p64
    %s67 = sadd.s32 %s66, 1
    %p70 = scmp.eq.s32.totalorder %s11, 1
    %p71 = scmp.ne.s32.totalorder %s66, %s68
    %p72 = scmp.eq.s32.totalorder %s11, 0
    %p73 = por %p71, %p72
    %p74 = scmp.ne.s32.totalorder %s66, %s68
    %p75 = scmp.eq.s32.totalorder %s16, 1
    %p76 = por %p74, %p75
    %p77 = scmp.ne.s32.totalorder %s68, %s69
    %p78 = scmp.eq.s32.totalorder %s16, 0
    %p79 = por %p77, %p78
    %p80 = scmp.ne.s32.totalorder %s68, %s69
    %p81 = scmp.eq.s32.totalorder %s17, 1
    %p82 = por %p80, %p81
    %p84 = scmp.ne.s32.totalorder %s69, %s83
    %p85 = scmp.eq.s32.totalorder %s17, 0
    %p86 = por %p84, %p85
    %s88 = sadd.s32 %s87, 1
    %p91 = scmp.eq.s32.totalorder %s11, 1
    %p92 = scmp.ne.s32.totalorder %s87, %s89
    %p93 = scmp.eq.s32.totalorder %s11, 0
    %p94 = por %p92, %p93
    %p95 = scmp.ne.s32.totalorder %s87, %s89
    %p96 = scmp.eq.s32.totalorder %s16, 1
    %p97 = por %p95, %p96
    %p98 = scmp.ne.s32.totalorder %s89, %s90
    %p99 = scmp.eq.s32.totalorder %s16, 0
    %p100 = por %p98, %p99
    %p101 = scmp.ne.s32.totalorder %s89, %s90
    %p102 = scmp.eq.s32.totalorder %s17, 1
    %p103 = por %p101, %p102
    %p105 = scmp.ne.s32.totalorder %s90, %s104
    %p106 = scmp.eq.s32.totalorder %s17, 0
    %p107 = por %p105, %p106
    %s109 = sadd.s32 %s108, 1
    %p112 = scmp.eq.s32.totalorder %s11, 1
    %p113 = scmp.ne.s32.totalorder %s108, %s110
    %p114 = scmp.eq.s32.totalorder %s11, 0
    %p115 = por %p113, %p114
    %p116 = scmp.ne.s32.totalorder %s108, %s110
    %p117 = scmp.eq.s32.totalorder %s16, 1
    %p118 = por %p116, %p117
    %p119 = scmp.ne.s32.totalorder %s110, %s111
    %p120 = scmp.eq.s32.totalorder %s16, 0
    %p121 = por %p119, %p120
    %p122 = scmp.ne.s32.totalorder %s110, %s111
    %p123 = scmp.eq.s32.totalorder %s17, 1
    %p124 = por %p122, %p123
    %p126 = scmp.ne.s32.totalorder %s111, %s125
    %p127 = scmp.eq.s32.totalorder %s17, 0
    %p128 = por %p126, %p127
    %s129 = ssub.s32 %s11, %s18
    %p130 = scmp.eq.s32.totalorder %s129, 0
    %s132 = sadd.s32 %s131, 1
    %s133 = scalar_select %p130, %s131, %s132
    %p136 = pneg %p130
    %p137 = scmp.eq.s32.totalorder %s11, 1
    %p138 = por %p136, %p137
    %p139 = scmp.ne.s32.totalorder %s131, %s134
    %p140 = scmp.eq.s32.totalorder %s11, 0
    %p141 = por %p139, %p140
    %p142 = scmp.ne.s32.totalorder %s131, %s134
    %p143 = scmp.eq.s32.totalorder %s16, 1
    %p144 = por %p142, %p143
    %p145 = scmp.ne.s32.totalorder %s134, %s135
    %p146 = scmp.eq.s32.totalorder %s16, 0
    %p147 = por %p145, %p146
    %p148 = scmp.ne.s32.totalorder %s134, %s135
    %p149 = scmp.eq.s32.totalorder %s17, 1
    %p150 = por %p148, %p149
    %p152 = scmp.ne.s32.totalorder %s135, %s151
    %p153 = scmp.eq.s32.totalorder %s17, 0
    %p154 = por %p152, %p153
    %p155 = scmp.le.s32.totalorder 1, %s11
    %p156 = scmp.lt.s32.totalorder %s11, 3
    %p157 = pnand %p155, %p156
    %p158 = pneg %p157
    // Predicated region
    $region9: #{block_forward.1} parent=5 // pred_check
      _
    $region10: #{block_forward.1} parent=5 // pred_check_branch
      %160 = sbr.rel (%p157) target = $region12
    $region11: #{block_forward.1} parent=5 // pred_region
      %s161 = ssub.s32 %s11, 1
      // Predicated region
      $region13: #{block_forward.1} parent=11 // pred_check
        %p162 = pneg %p58
      $region14: #{block_forward.1} parent=11 // pred_check_branch
        %164 = sbr.rel (%p162) target = $region16
      $region15: #{block_forward.1} parent=11 // pred_region
        _
      $region16: #{block_forward.1} parent=11 // pred_fallthru
        _
      // Predicated region
      $region17: #{block_forward.1} parent=11 // pred_check
        %p165 = pneg %p79
      $region18: #{block_forward.1} parent=11 // pred_check_branch
        %167 = sbr.rel (%p165) target = $region20
      $region19: #{block_forward.1} parent=11 // pred_region
        _
      $region20: #{block_forward.1} parent=11 // pred_fallthru
        _
      // Predicated region
      $region21: #{block_forward.1} parent=11 // pred_check
        %p168 = pneg %p100
      $region22: #{block_forward.1} parent=11 // pred_check_branch
        %170 = sbr.rel (%p168) target = $region24
      $region23: #{block_forward.1} parent=11 // pred_region
        _
      $region24: #{block_forward.1} parent=11 // pred_fallthru
        _
      // Predicated region
      $region25: #{block_forward.1} parent=11 // pred_check
        %p171 = pneg %p121
      $region26: #{block_forward.1} parent=11 // pred_check_branch
        %173 = sbr.rel (%p171) target = $region28
      $region27: #{block_forward.1} parent=11 // pred_region
        _
      $region28: #{block_forward.1} parent=11 // pred_fallthru
        _
    $region12: #{block_forward.1} parent=5 // pred_fallthru
      _
    %p174 = scmp.lt.s32.totalorder %s11, 2
    // Predicated region
    $region29: #{block_forward.1} parent=5 // pred_check
      %p175 = pneg %p174
    $region30: #{block_forward.1} parent=5 // pred_check_branch
      %177 = sbr.rel (%p175) target = $region32
    $region31: #{block_forward.1} parent=5 // pred_region
      // Predicated region
      $region33: #{block_forward.1} parent=31 // pred_check
        %p178 = pneg %p31
      $region34: #{block_forward.1} parent=31 // pred_check_branch
        %180 = sbr.rel (%p178) target = $region36
      $region35: #{block_forward.1} parent=31 // pred_region
        %p181 = scmp.lt.s32.totalorder %s11, 1
        %s182 = scalar_select %p181, %s11, 1
        %s183 = smul.addr %s182, 2
        %s184 = smul.addr %s183, 4
        %s185 = scalar_lea.vmem %s0, %s184
      $region36: #{block_forward.1} parent=31 // pred_fallthru
        _
    $region32: #{block_forward.1} parent=5 // pred_fallthru
      _
    %p186 = scmp.le.s32.totalorder 1, %s11
    %p187 = scmp.lt.s32.totalorder %s11, 3
    %p188 = pnand %p186, %p187
    %p189 = pneg %p188
    // Predicated region
    $region37: #{block_forward.1} parent=5 // pred_check
      _
    $region38: #{block_forward.1} parent=5 // pred_check_branch
      %191 = sbr.rel (%p188) target = $region40
    $region39: #{block_forward.1} parent=5 // pred_region
      %s192 = ssub.s32 %s11, 1
      %p193 = scmp.lt.s32.totalorder %s16, 1
      %s194 = scalar_select %p193, %s16, 1
      %s195 = smul.addr %s194, 2
      %s196 = smul.addr %s195, 4
      %s197 = scalar_lea.vmem %s0, %s196
      %p198 = pneg %p37
      %p199 = pneg %p34
      %p200 = pneg %p58
      %p201 = pneg %p55
      %p202 = pneg %p79
      %p203 = pneg %p76
      %p204 = pneg %p100
      %p205 = pneg %p97
      %p206 = pneg %p121
      %p207 = pneg %p118
      %p208 = pneg %p147
      %p209 = pneg %p144
      %p210 = scmp.lt.s32.totalorder %s16, 1
      %s211 = scalar_select %p210, %s16, 1
      %s212 = smul.addr %s211, 2
      %s213 = smul.addr %s212, 8
      %s214 = scalar_lea.vmem %s5, %s213
      %p215 = scmp.lt.s32.totalorder %s16, 1
      %s216 = scalar_select %p215, %s16, 1
      %s217 = smul.addr %s216, 2
      %s218 = smul.addr %s217, 4
      %s219 = scalar_lea.vmem %s0, %s218
      %p220 = scmp.lt.s32.totalorder %s16, 1
      %s221 = scalar_select %p220, %s16, 1
      %s222 = smul.addr %s221, 2
      %s223 = smul.addr %s222, 8
      %s224 = scalar_lea.vmem %s5, %s223
      %v225 = vlaneseq
      %v226 = vand.u32 %v225, 127
      %v227 = vadd.s32 %v226, 128
      %vm228 = vcmp.lt.s32.totalorder %v226, 0
      %v229 = vsub.s32 0, %v226
      %v230 = vsel %vm228, %v229, %v226
      %v231 = vshrl.u32 %v230, 4
      %v232 = vand.u32 %v230, 15
      %v233 = vsub.s32 0, %v232
      %v234 = vsel %vm228, %v233, %v232
      %vm235 = vcmp.lt.s32.totalorder %v227, 0
      %v236 = vsub.s32 0, %v227
      %v237 = vsel %vm235, %v236, %v227
      %v238 = vshrl.u32 %v237, 4
      %v239 = vand.u32 %v237, 15
      %v240 = vsub.s32 0, %v239
      %v241 = vsel %vm235, %v240, %v239
      %vm242 = vcmp.ne.s32.totalorder %v234, 0
      %vm243 = vcmp.ne.s32.totalorder %v241, 0
      %vm244 = vcmp.lt.s32.totalorder %v234, 0
      %vm245 = vcmp.lt.s32.totalorder %v241, 0
      %vm246 = vmand %vm244, %vm242
      %vm247 = vmand %vm245, %vm243
      %v248 = vadd.s32 %v234, 16
      %v249 = vadd.s32 %v241, 16
      %v250 = vsel %vm246, %v248, %v234
      %v251 = vsel %vm247, %v249, %v241
      %vm252 = vcmp.ge.s32.totalorder %v250, 1
      %vm253 = vcmp.ge.s32.totalorder %v251, 1
      %vm254 = vcmp.le.s32.totalorder %v250, 14
      %vm255 = vcmp.le.s32.totalorder %v251, 14
      %v256 = vld [vmem:[%s219] sm:$0xff]
      %vm257 = vcmask 134144
      %258 = vst.msk [vmem:[#allocation2] sm:$0xf] %vm257, 0.0
      %vm259 = vcmask 273544
      %260 = vst.msk [vmem:[#allocation2 + $0x8] sm:$0xf] %vm259, 0.0
      %262 = vrot.lane.b32.xlu0 %v256, 17
      %v263 = vpop.permute.xlu0 %262
      %v264 = vrot.slane %v263, 4
      %vm265 = vcmask 138240
      %v266 = vsel %vm265, %v264, %v263
      %vm269 = vcmask 1043592
      %vm270 = vcmask 1047556
      %vm271 = vmor %vm270, %vm269
      %272 = vst.msk [vmem:[#allocation2] sm:$0xff] %vm271, %v266
      %273 = vst.msk [vmem:[#allocation2 + $0x8] sm:$0xf] %vm257, %v264
      %v274 = vld [vmem:[#allocation2] sm:$0xff]
      %v275 = vsel %vm252, 1, 0
      %v276 = vsel %vm253, 1, 0
      %vm277 = vcmp.eq.s32.totalorder %v275, 1
      %vm278 = vcmp.eq.s32.totalorder %v276, 1
      %v280 = vcombine.high %v274, %v274
      %v282 = vsel %vm277, %v274, 0.0
      %v283 = vsel %vm278, %v280, 0.0
      %v284 = vld [vmem:[%s1] sm:$0xff]
      %v285 = vld [vmem:[#allocation2 + $0x8] sm:$0xf]
      %s286 = scalar_lea.vmem %s1, 8
      %v287 = vld [vmem:[%s286] sm:$0xff]
      %289 = vrot.lane.b32.xlu0 %v274, 127
      %v290 = vpop.permute.xlu0 %289
      %291 = vrot.lane.b32.xlu0 %v280, 127
      %v292 = vpop.permute.xlu0 %291
      %293 = vrot.lane.b32.xlu0 %v285, 127
      %v294 = vpop.permute.xlu0 %293
      %vm295 = vcmask 1039360
      %v296 = vsel %vm295, %v290, %v292
      %v297 = vsel %vm295, %v292, %v294
      %vm298 = vcmask 31744
      %v300 = vsel %vm298, %v287, 0
      %vm302 = vcmask 1043456
      %v303 = vsel %vm302, %v296, 0
      %v305 = vsel %vm302, %v297, 0
      %307 = vmatprep.subr.mxu0 %v305
      %308 = vmatpush1.msra.mxu0 %v303
      %309 = vmatprep.subr.mxu0 0.0
      %310 = vmatpush1.msra.mxu0 0.0
      %311 = vmatprep.subr.mxu0 0.0
      %312 = vmatpush1.msra.mxu0 0.0
      %313 = vmatprep.subr.mxu0 0.0
      %314 = vmatpush1.msra.mxu0 0.0
      %315 = vmatprep.subr.mxu0 0.0
      %316 = vmatpush1.msra.mxu0 0.0
      %317 = vmatprep.subr.mxu0 0.0
      %318 = vmatpush1.msra.mxu0 0.0
      %319 = vmatprep.subr.mxu0 0.0
      %320 = vmatpush1.msra.mxu0 0.0
      %321 = vmatprep.subr.mxu0 0.0
      %322 = vmatpush1.msra.mxu0 0.0
      %323 = vmatprep.subr.mxu0 0.0
      %324 = vmatpush1.msra.mxu0 0.0
      %325 = vmatprep.subr.mxu0 0.0
      %326 = vmatpush1.msra.mxu0 0.0
      %327 = vmatprep.subr.mxu0 0.0
      %328 = vmatpush1.msra.mxu0 0.0
      %329 = vmatprep.subr.mxu0 0.0
      %330 = vmatpush1.msra.mxu0 0.0
      %331 = vmatprep.subr.mxu0 0.0
      %332 = vmatpush1.msra.mxu0 0.0
      %333 = vmatprep.subr.mxu0 0.0
      %334 = vmatpush1.msra.mxu0 0.0
      %335 = vmatprep.subr.mxu0 0.0
      %336 = vmatpush1.msra.mxu0 0.0
      %337 = vmatprep.subr.mxu0 0.0
      %338 = vmatpush1.msra.mxu0 0.0
      %339 = vmatprep.subr.mxu0 0.0
      %340 = vmatpush1.msra.mxu0 0.0
      %341 = vmatprep.subr.mxu0 0.0
      %342 = vmatpush1.msra.mxu0 0.0
      %343 = vmatprep.subr.mxu0 0.0
      %344 = vmatpush1.msra.mxu0 0.0
      %345 = vmatprep.subr.mxu0 0.0
      %346 = vmatpush1.msra.mxu0 0.0
      %347 = vmatprep.subr.mxu0 0.0
      %348 = vmatpush1.msra.mxu0 0.0
      %349 = vmatprep.subr.mxu0 0.0
      %350 = vmatpush1.msra.mxu0 0.0
      %351 = vmatprep.subr.mxu0 0.0
      %352 = vmatpush1.msra.mxu0 0.0
      %353 = vmatprep.subr.mxu0 0.0
      %354 = vmatpush1.msra.mxu0 0.0
      %355 = vmatprep.subr.mxu0 0.0
      %356 = vmatpush1.msra.mxu0 0.0
      %357 = vmatprep.subr.mxu0 0.0
      %358 = vmatpush1.msra.mxu0 0.0
      %359 = vmatprep.subr.mxu0 0.0
      %360 = vmatpush1.msra.mxu0 0.0
      %361 = vmatprep.subr.mxu0 0.0
      %362 = vmatpush1.msra.mxu0 0.0
      %363 = vmatprep.subr.mxu0 0.0
      %364 = vmatpush1.msra.mxu0 0.0
      %365 = vmatprep.subr.mxu0 0.0
      %366 = vmatpush1.msra.mxu0 0.0
      %367 = vmatprep.subr.mxu0 0.0
      %368 = vmatpush1.msra.mxu0 0.0
      %369 = vmatprep.subr.mxu0 0.0
      %370 = vmatpush1.msra.mxu0 0.0
      %371 = vmatprep.mubr.f32.mxu0 0.0
      %372 = vmatmul.mubr.f32.gmra.mrb[0].mxu0 %v300
      %v373 = vpop.f32.mrb[0].mxu0
      %v374 = vadd.f32 0.0, %v373
      %v375 = vpop.f32.mrb[0].mxu0
      %v376 = vadd.f32 0.0, %v375
      %377 = vdwg.mxu0
      %v379 = vsel %vm298, %v284, 0
      %v382 = vsel %vm302, %v282, 0
      %v385 = vsel %vm302, %v283, 0
      %387 = vmatprep.subr.mxu0 %v385
      %388 = vmatpush1.msra.mxu0 %v382
      %389 = vmatprep.subr.mxu0 0.0
      %390 = vmatpush1.msra.mxu0 0.0
      %391 = vmatprep.subr.mxu0 0.0
      %392 = vmatpush1.msra.mxu0 0.0
      %393 = vmatprep.subr.mxu0 0.0
      %394 = vmatpush1.msra.mxu0 0.0
      %395 = vmatprep.subr.mxu0 0.0
      %396 = vmatpush1.msra.mxu0 0.0
      %397 = vmatprep.subr.mxu0 0.0
      %398 = vmatpush1.msra.mxu0 0.0
      %399 = vmatprep.subr.mxu0 0.0
      %400 = vmatpush1.msra.mxu0 0.0
      %401 = vmatprep.subr.mxu0 0.0
      %402 = vmatpush1.msra.mxu0 0.0
      %403 = vmatprep.subr.mxu0 0.0
      %404 = vmatpush1.msra.mxu0 0.0
      %405 = vmatprep.subr.mxu0 0.0
      %406 = vmatpush1.msra.mxu0 0.0
      %407 = vmatprep.subr.mxu0 0.0
      %408 = vmatpush1.msra.mxu0 0.0
      %409 = vmatprep.subr.mxu0 0.0
      %410 = vmatpush1.msra.mxu0 0.0
      %411 = vmatprep.subr.mxu0 0.0
      %412 = vmatpush1.msra.mxu0 0.0
      %413 = vmatprep.subr.mxu0 0.0
      %414 = vmatpush1.msra.mxu0 0.0
      %415 = vmatprep.subr.mxu0 0.0
      %416 = vmatpush1.msra.mxu0 0.0
      %417 = vmatprep.subr.mxu0 0.0
      %418 = vmatpush1.msra.mxu0 0.0
      %419 = vmatprep.subr.mxu0 0.0
      %420 = vmatpush1.msra.mxu0 0.0
      %421 = vmatprep.subr.mxu0 0.0
      %422 = vmatpush1.msra.mxu0 0.0
      %423 = vmatprep.subr.mxu0 0.0
      %424 = vmatpush1.msra.mxu0 0.0
      %425 = vmatprep.subr.mxu0 0.0
      %426 = vmatpush1.msra.mxu0 0.0
      %427 = vmatprep.subr.mxu0 0.0
      %428 = vmatpush1.msra.mxu0 0.0
      %429 = vmatprep.subr.mxu0 0.0
      %430 = vmatpush1.msra.mxu0 0.0
      %431 = vmatprep.subr.mxu0 0.0
      %432 = vmatpush1.msra.mxu0 0.0
      %433 = vmatprep.subr.mxu0 0.0
      %434 = vmatpush1.msra.mxu0 0.0
      %435 = vmatprep.subr.mxu0 0.0
      %436 = vmatpush1.msra.mxu0 0.0
      %437 = vmatprep.subr.mxu0 0.0
      %438 = vmatpush1.msra.mxu0 0.0
      %439 = vmatprep.subr.mxu0 0.0
      %440 = vmatpush1.msra.mxu0 0.0
      %441 = vmatprep.subr.mxu0 0.0
      %442 = vmatpush1.msra.mxu0 0.0
      %443 = vmatprep.subr.mxu0 0.0
      %444 = vmatpush1.msra.mxu0 0.0
      %445 = vmatprep.subr.mxu0 0.0
      %446 = vmatpush1.msra.mxu0 0.0
      %447 = vmatprep.subr.mxu0 0.0
      %448 = vmatpush1.msra.mxu0 0.0
      %449 = vmatprep.subr.mxu0 0.0
      %450 = vmatpush1.msra.mxu0 0.0
      %451 = vmatprep.mubr.f32.mxu0 0.0
      %452 = vmatmul.mubr.f32.gmra.mrb[0].mxu0 %v379
      %v453 = vpop.f32.mrb[0].mxu0
      %v454 = vadd.f32 %v374, %v453
      %v455 = vpop.f32.mrb[0].mxu0
      %v456 = vadd.f32 %v376, %v455
      %457 = vdwg.mxu0
      %v458 = vld [vmem:[#allocation2] sm:$0xff]
      %v459 = vld [vmem:[#allocation2 + $0x8] sm:$0xf]
      %v460 = vsel %vm254, 1, 0
      %v461 = vsel %vm255, 1, 0
      %vm462 = vcmp.eq.s32.totalorder %v460, 1
      %vm463 = vcmp.eq.s32.totalorder %v461, 1
      %v466 = vcombine.high %v458, %v458
      %467 = vrot.lane.b32.xlu0 %v458, 126
      %v468 = vpop.permute.xlu0 %467
      %469 = vrot.lane.b32.xlu0 %v466, 126
      %v470 = vpop.permute.xlu0 %469
      %471 = vrot.lane.b32.xlu0 %v459, 126
      %v472 = vpop.permute.xlu0 %471
      %vm473 = vcmask 1031168
      %v474 = vsel %vm473, %v468, %v470
      %v475 = vsel %vm473, %v470, %v472
      %v478 = vsel %vm462, %v474, 0.0
      %v479 = vsel %vm463, %v475, 0.0
      %s480 = scalar_lea.vmem %s1, 16
      %v481 = vld [vmem:[%s480] sm:$0xff]
      %v483 = vsel %vm298, %v481, 0
      %v486 = vsel %vm302, %v478, 0
      %v489 = vsel %vm302, %v479, 0
      %491 = vmatprep.subr.mxu0 %v489
      %492 = vmatpush1.msra.mxu0 %v486
      %493 = vmatprep.subr.mxu0 0.0
      %494 = vmatpush1.msra.mxu0 0.0
      %495 = vmatprep.subr.mxu0 0.0
      %496 = vmatpush1.msra.mxu0 0.0
      %497 = vmatprep.subr.mxu0 0.0
      %498 = vmatpush1.msra.mxu0 0.0
      %499 = vmatprep.subr.mxu0 0.0
      %500 = vmatpush1.msra.mxu0 0.0
      %501 = vmatprep.subr.mxu0 0.0
      %502 = vmatpush1.msra.mxu0 0.0
      %503 = vmatprep.subr.mxu0 0.0
      %504 = vmatpush1.msra.mxu0 0.0
      %505 = vmatprep.subr.mxu0 0.0
      %506 = vmatpush1.msra.mxu0 0.0
      %507 = vmatprep.subr.mxu0 0.0
      %508 = vmatpush1.msra.mxu0 0.0
      %509 = vmatprep.subr.mxu0 0.0
      %510 = vmatpush1.msra.mxu0 0.0
      %511 = vmatprep.subr.mxu0 0.0
      %512 = vmatpush1.msra.mxu0 0.0
      %513 = vmatprep.subr.mxu0 0.0
      %514 = vmatpush1.msra.mxu0 0.0
      %515 = vmatprep.subr.mxu0 0.0
      %516 = vmatpush1.msra.mxu0 0.0
      %517 = vmatprep.subr.mxu0 0.0
      %518 = vmatpush1.msra.mxu0 0.0
      %519 = vmatprep.subr.mxu0 0.0
      %520 = vmatpush1.msra.mxu0 0.0
      %521 = vmatprep.subr.mxu0 0.0
      %522 = vmatpush1.msra.mxu0 0.0
      %523 = vmatprep.subr.mxu0 0.0
      %524 = vmatpush1.msra.mxu0 0.0
      %525 = vmatprep.subr.mxu0 0.0
      %526 = vmatpush1.msra.mxu0 0.0
      %527 = vmatprep.subr.mxu0 0.0
      %528 = vmatpush1.msra.mxu0 0.0
      %529 = vmatprep.subr.mxu0 0.0
      %530 = vmatpush1.msra.mxu0 0.0
      %531 = vmatprep.subr.mxu0 0.0
      %532 = vmatpush1.msra.mxu0 0.0
      %533 = vmatprep.subr.mxu0 0.0
      %534 = vmatpush1.msra.mxu0 0.0
      %535 = vmatprep.subr.mxu0 0.0
      %536 = vmatpush1.msra.mxu0 0.0
      %537 = vmatprep.subr.mxu0 0.0
      %538 = vmatpush1.msra.mxu0 0.0
      %539 = vmatprep.subr.mxu0 0.0
      %540 = vmatpush1.msra.mxu0 0.0
      %541 = vmatprep.subr.mxu0 0.0
      %542 = vmatpush1.msra.mxu0 0.0
      %543 = vmatprep.subr.mxu0 0.0
      %544 = vmatpush1.msra.mxu0 0.0
      %545 = vmatprep.subr.mxu0 0.0
      %546 = vmatpush1.msra.mxu0 0.0
      %547 = vmatprep.subr.mxu0 0.0
      %548 = vmatpush1.msra.mxu0 0.0
      %549 = vmatprep.subr.mxu0 0.0
      %550 = vmatpush1.msra.mxu0 0.0
      %551 = vmatprep.subr.mxu0 0.0
      %552 = vmatpush1.msra.mxu0 0.0
      %553 = vmatprep.subr.mxu0 0.0
      %554 = vmatpush1.msra.mxu0 0.0
      %555 = vmatprep.mubr.f32.mxu0 0.0
      %556 = vmatmul.mubr.f32.gmra.mrb[0].mxu0 %v483
      %v557 = vpop.f32.mrb[0].mxu0
      %v558 = vadd.f32 0.0, %v557
      %v559 = vpop.f32.mrb[0].mxu0
      %v560 = vadd.f32 0.0, %v559
      %561 = vdwg.mxu0
      %v562 = vadd.f32 %v454, %v558
      %v563 = vadd.f32 %v456, %v560
      %v564 = vld [vmem:[#allocation2] sm:$0xff]
      %v565 = vld [vmem:[#allocation2 + $0x8] sm:$0xf]
      %v568 = vcombine.high %v564, %v564
      %569 = vrot.lane.b32.xlu0 %v564, 112
      %v570 = vpop.permute.xlu0 %569
      %571 = vrot.lane.b32.xlu0 %v568, 112
      %v572 = vpop.permute.xlu0 %571
      %573 = vrot.lane.b32.xlu0 %v565, 112
      %v574 = vpop.permute.xlu0 %573
      %vm575 = vcmask 916480
      %v576 = vsel %vm575, %v570, %v572
      %v577 = vsel %vm575, %v572, %v574
      %v580 = vsel %vm277, %v576, 0.0
      %v581 = vsel %vm278, %v577, 0.0
      %s582 = scalar_lea.vmem %s1, 24
      %v583 = vld [vmem:[%s582] sm:$0xff]
      %v585 = vsel %vm298, %v583, 0
      %v588 = vsel %vm302, %v580, 0
      %v591 = vsel %vm302, %v581, 0
      %593 = vmatprep.subr.mxu0 %v591
      %594 = vmatpush1.msra.mxu0 %v588
      %595 = vmatprep.subr.mxu0 0.0
      %596 = vmatpush1.msra.mxu0 0.0
      %597 = vmatprep.subr.mxu0 0.0
      %598 = vmatpush1.msra.mxu0 0.0
      %599 = vmatprep.subr.mxu0 0.0
      %600 = vmatpush1.msra.mxu0 0.0
      %601 = vmatprep.subr.mxu0 0.0
      %602 = vmatpush1.msra.mxu0 0.0
      %603 = vmatprep.subr.mxu0 0.0
      %604 = vmatpush1.msra.mxu0 0.0
      %605 = vmatprep.subr.mxu0 0.0
      %606 = vmatpush1.msra.mxu0 0.0
      %607 = vmatprep.subr.mxu0 0.0
      %608 = vmatpush1.msra.mxu0 0.0
      %609 = vmatprep.subr.mxu0 0.0
      %610 = vmatpush1.msra.mxu0 0.0
      %611 = vmatprep.subr.mxu0 0.0
      %612 = vmatpush1.msra.mxu0 0.0
      %613 = vmatprep.subr.mxu0 0.0
      %614 = vmatpush1.msra.mxu0 0.0
      %615 = vmatprep.subr.mxu0 0.0
      %616 = vmatpush1.msra.mxu0 0.0
      %617 = vmatprep.subr.mxu0 0.0
      %618 = vmatpush1.msra.mxu0 0.0
      %619 = vmatprep.subr.mxu0 0.0
      %620 = vmatpush1.msra.mxu0 0.0
      %621 = vmatprep.subr.mxu0 0.0
      %622 = vmatpush1.msra.mxu0 0.0
      %623 = vmatprep.subr.mxu0 0.0
      %624 = vmatpush1.msra.mxu0 0.0
      %625 = vmatprep.subr.mxu0 0.0
      %626 = vmatpush1.msra.mxu0 0.0
      %627 = vmatprep.subr.mxu0 0.0
      %628 = vmatpush1.msra.mxu0 0.0
      %629 = vmatprep.subr.mxu0 0.0
      %630 = vmatpush1.msra.mxu0 0.0
      %631 = vmatprep.subr.mxu0 0.0
      %632 = vmatpush1.msra.mxu0 0.0
      %633 = vmatprep.subr.mxu0 0.0
      %634 = vmatpush1.msra.mxu0 0.0
      %635 = vmatprep.subr.mxu0 0.0
      %636 = vmatpush1.msra.mxu0 0.0
      %637 = vmatprep.subr.mxu0 0.0
      %638 = vmatpush1.msra.mxu0 0.0
      %639 = vmatprep.subr.mxu0 0.0
      %640 = vmatpush1.msra.mxu0 0.0
      %641 = vmatprep.subr.mxu0 0.0
      %642 = vmatpush1.msra.mxu0 0.0
      %643 = vmatprep.subr.mxu0 0.0
      %644 = vmatpush1.msra.mxu0 0.0
      %645 = vmatprep.subr.mxu0 0.0
      %646 = vmatpush1.msra.mxu0 0.0
      %647 = vmatprep.subr.mxu0 0.0
      %648 = vmatpush1.msra.mxu0 0.0
      %649 = vmatprep.subr.mxu0 0.0
      %650 = vmatpush1.msra.mxu0 0.0
      %651 = vmatprep.subr.mxu0 0.0
      %652 = vmatpush1.msra.mxu0 0.0
      %653 = vmatprep.subr.mxu0 0.0
      %654 = vmatpush1.msra.mxu0 0.0
      %655 = vmatprep.subr.mxu0 0.0
      %656 = vmatpush1.msra.mxu0 0.0
      %657 = vmatprep.mubr.f32.mxu0 0.0
      %658 = vmatmul.mubr.f32.gmra.mrb[0].mxu0 %v585
      %v659 = vpop.f32.mrb[0].mxu0
      %v660 = vadd.f32 0.0, %v659
      %v661 = vpop.f32.mrb[0].mxu0
      %v662 = vadd.f32 0.0, %v661
      %663 = vdwg.mxu0
      %v664 = vadd.f32 %v562, %v660
      %v665 = vadd.f32 %v563, %v662
      %v666 = vld [vmem:[#allocation2] sm:$0xff]
      %v667 = vld [vmem:[#allocation2 + $0x8] sm:$0xf]
      %s668 = scalar_lea.vmem %s1, 32
      %v669 = vld [vmem:[%s668] sm:$0xff]
      %v672 = vcombine.high %v666, %v666
      %673 = vrot.lane.b32.xlu0 %v666, 111
      %v674 = vpop.permute.xlu0 %673
      %675 = vrot.lane.b32.xlu0 %v672, 111
      %v676 = vpop.permute.xlu0 %675
      %677 = vrot.lane.b32.xlu0 %v667, 111
      %v678 = vpop.permute.xlu0 %677
      %vm679 = vcmask 908288
      %v680 = vsel %vm679, %v674, %v676
      %v681 = vsel %vm679, %v676, %v678
      %v683 = vsel %vm298, %v669, 0
      %v685 = vsel %vm302, %v680, 0
      %v687 = vsel %vm302, %v681, 0
      %689 = vmatprep.subr.mxu0 %v687
      %690 = vmatpush1.msra.mxu0 %v685
      %691 = vmatprep.subr.mxu0 0.0
      %692 = vmatpush1.msra.mxu0 0.0
      %693 = vmatprep.subr.mxu0 0.0
      %694 = vmatpush1.msra.mxu0 0.0
      %695 = vmatprep.subr.mxu0 0.0
      %696 = vmatpush1.msra.mxu0 0.0
      %697 = vmatprep.subr.mxu0 0.0
      %698 = vmatpush1.msra.mxu0 0.0
      %699 = vmatprep.subr.mxu0 0.0
      %700 = vmatpush1.msra.mxu0 0.0
      %701 = vmatprep.subr.mxu0 0.0
      %702 = vmatpush1.msra.mxu0 0.0
      %703 = vmatprep.subr.mxu0 0.0
      %704 = vmatpush1.msra.mxu0 0.0
      %705 = vmatprep.subr.mxu0 0.0
      %706 = vmatpush1.msra.mxu0 0.0
      %707 = vmatprep.subr.mxu0 0.0
      %708 = vmatpush1.msra.mxu0 0.0
      %709 = vmatprep.subr.mxu0 0.0
      %710 = vmatpush1.msra.mxu0 0.0
      %711 = vmatprep.subr.mxu0 0.0
      %712 = vmatpush1.msra.mxu0 0.0
      %713 = vmatprep.subr.mxu0 0.0
      %714 = vmatpush1.msra.mxu0 0.0
      %715 = vmatprep.subr.mxu0 0.0
      %716 = vmatpush1.msra.mxu0 0.0
      %717 = vmatprep.subr.mxu0 0.0
      %718 = vmatpush1.msra.mxu0 0.0
      %719 = vmatprep.subr.mxu0 0.0
      %720 = vmatpush1.msra.mxu0 0.0
      %721 = vmatprep.subr.mxu0 0.0
      %722 = vmatpush1.msra.mxu0 0.0
      %723 = vmatprep.subr.mxu0 0.0
      %724 = vmatpush1.msra.mxu0 0.0
      %725 = vmatprep.subr.mxu0 0.0
      %726 = vmatpush1.msra.mxu0 0.0
      %727 = vmatprep.subr.mxu0 0.0
      %728 = vmatpush1.msra.mxu0 0.0
      %729 = vmatprep.subr.mxu0 0.0
      %730 = vmatpush1.msra.mxu0 0.0
      %731 = vmatprep.subr.mxu0 0.0
      %732 = vmatpush1.msra.mxu0 0.0
      %733 = vmatprep.subr.mxu0 0.0
      %734 = vmatpush1.msra.mxu0 0.0
      %735 = vmatprep.subr.mxu0 0.0
      %736 = vmatpush1.msra.mxu0 0.0
      %737 = vmatprep.subr.mxu0 0.0
      %738 = vmatpush1.msra.mxu0 0.0
      %739 = vmatprep.subr.mxu0 0.0
      %740 = vmatpush1.msra.mxu0 0.0
      %741 = vmatprep.subr.mxu0 0.0
      %742 = vmatpush1.msra.mxu0 0.0
      %743 = vmatprep.subr.mxu0 0.0
      %744 = vmatpush1.msra.mxu0 0.0
      %745 = vmatprep.subr.mxu0 0.0
      %746 = vmatpush1.msra.mxu0 0.0
      %747 = vmatprep.subr.mxu0 0.0
      %748 = vmatpush1.msra.mxu0 0.0
      %749 = vmatprep.subr.mxu0 0.0
      %750 = vmatpush1.msra.mxu0 0.0
      %751 = vmatprep.subr.mxu0 0.0
      %752 = vmatpush1.msra.mxu0 0.0
      %753 = vmatprep.mubr.f32.mxu0 0.0
      %754 = vmatmul.mubr.f32.gmra.mrb[0].mxu0 %v683
      %v755 = vpop.f32.mrb[0].mxu0
      %v756 = vadd.f32 0.0, %v755
      %v757 = vpop.f32.mrb[0].mxu0
      %v758 = vadd.f32 0.0, %v757
      %759 = vdwg.mxu0
      %v760 = vadd.f32 %v664, %v756
      %v761 = vadd.f32 %v665, %v758
      %v762 = vld [vmem:[#allocation2] sm:$0xff]
      %v763 = vld [vmem:[#allocation2 + $0x8] sm:$0xf]
      %v766 = vcombine.high %v762, %v762
      %767 = vrot.lane.b32.xlu0 %v762, 110
      %v768 = vpop.permute.xlu0 %767
      %769 = vrot.lane.b32.xlu0 %v766, 110
      %v770 = vpop.permute.xlu0 %769
      %771 = vrot.lane.b32.xlu0 %v763, 110
      %v772 = vpop.permute.xlu0 %771
      %vm773 = vcmask 900096
      %v774 = vsel %vm773, %v768, %v770
      %v775 = vsel %vm773, %v770, %v772
      %v778 = vsel %vm462, %v774, 0.0
      %v779 = vsel %vm463, %v775, 0.0
      %s780 = scalar_lea.vmem %s1, 40
      %v781 = vld [vmem:[%s780] sm:$0xff]
      %v783 = vsel %vm298, %v781, 0
      %v786 = vsel %vm302, %v778, 0
      %v789 = vsel %vm302, %v779, 0
      %791 = vmatprep.subr.mxu0 %v789
      %792 = vmatpush1.msra.mxu0 %v786
      %793 = vmatprep.subr.mxu0 0.0
      %794 = vmatpush1.msra.mxu0 0.0
      %795 = vmatprep.subr.mxu0 0.0
      %796 = vmatpush1.msra.mxu0 0.0
      %797 = vmatprep.subr.mxu0 0.0
      %798 = vmatpush1.msra.mxu0 0.0
      %799 = vmatprep.subr.mxu0 0.0
      %800 = vmatpush1.msra.mxu0 0.0
      %801 = vmatprep.subr.mxu0 0.0
      %802 = vmatpush1.msra.mxu0 0.0
      %803 = vmatprep.subr.mxu0 0.0
      %804 = vmatpush1.msra.mxu0 0.0
      %805 = vmatprep.subr.mxu0 0.0
      %806 = vmatpush1.msra.mxu0 0.0
      %807 = vmatprep.subr.mxu0 0.0
      %808 = vmatpush1.msra.mxu0 0.0
      %809 = vmatprep.subr.mxu0 0.0
      %810 = vmatpush1.msra.mxu0 0.0
      %811 = vmatprep.subr.mxu0 0.0
      %812 = vmatpush1.msra.mxu0 0.0
      %813 = vmatprep.subr.mxu0 0.0
      %814 = vmatpush1.msra.mxu0 0.0
      %815 = vmatprep.subr.mxu0 0.0
      %816 = vmatpush1.msra.mxu0 0.0
      %817 = vmatprep.subr.mxu0 0.0
      %818 = vmatpush1.msra.mxu0 0.0
      %819 = vmatprep.subr.mxu0 0.0
      %820 = vmatpush1.msra.mxu0 0.0
      %821 = vmatprep.subr.mxu0 0.0
      %822 = vmatpush1.msra.mxu0 0.0
      %823 = vmatprep.subr.mxu0 0.0
      %824 = vmatpush1.msra.mxu0 0.0
      %825 = vmatprep.subr.mxu0 0.0
      %826 = vmatpush1.msra.mxu0 0.0
      %827 = vmatprep.subr.mxu0 0.0
      %828 = vmatpush1.msra.mxu0 0.0
      %829 = vmatprep.subr.mxu0 0.0
      %830 = vmatpush1.msra.mxu0 0.0
      %831 = vmatprep.subr.mxu0 0.0
      %832 = vmatpush1.msra.mxu0 0.0
      %833 = vmatprep.subr.mxu0 0.0
      %834 = vmatpush1.msra.mxu0 0.0
      %835 = vmatprep.subr.mxu0 0.0
      %836 = vmatpush1.msra.mxu0 0.0
      %837 = vmatprep.subr.mxu0 0.0
      %838 = vmatpush1.msra.mxu0 0.0
      %839 = vmatprep.subr.mxu0 0.0
      %840 = vmatpush1.msra.mxu0 0.0
      %841 = vmatprep.subr.mxu0 0.0
      %842 = vmatpush1.msra.mxu0 0.0
      %843 = vmatprep.subr.mxu0 0.0
      %844 = vmatpush1.msra.mxu0 0.0
      %845 = vmatprep.subr.mxu0 0.0
      %846 = vmatpush1.msra.mxu0 0.0
      %847 = vmatprep.subr.mxu0 0.0
      %848 = vmatpush1.msra.mxu0 0.0
      %849 = vmatprep.subr.mxu0 0.0
      %850 = vmatpush1.msra.mxu0 0.0
      %851 = vmatprep.subr.mxu0 0.0
      %852 = vmatpush1.msra.mxu0 0.0
      %853 = vmatprep.subr.mxu0 0.0
      %854 = vmatpush1.msra.mxu0 0.0
      %855 = vmatprep.mubr.f32.mxu0 0.0
      %856 = vmatmul.mubr.f32.gmra.mrb[0].mxu0 %v783
      %v857 = vpop.f32.mrb[0].mxu0
      %v858 = vadd.f32 0.0, %v857
      %v859 = vpop.f32.mrb[0].mxu0
      %v860 = vadd.f32 0.0, %v859
      %861 = vdwg.mxu0
      %v862 = vadd.f32 %v760, %v858
      %v863 = vadd.f32 %v761, %v860
      %v864 = vld [vmem:[#allocation2] sm:$0xff]
      %v865 = vld [vmem:[#allocation2 + $0x8] sm:$0xf]
      %v868 = vcombine.high %v864, %v864
      %869 = vrot.lane.b32.xlu0 %v864, 96
      %v870 = vpop.permute.xlu0 %869
      %871 = vrot.lane.b32.xlu0 %v868, 96
      %v872 = vpop.permute.xlu0 %871
      %873 = vrot.lane.b32.xlu0 %v865, 96
      %v874 = vpop.permute.xlu0 %873
      %vm875 = vcmask 785408
      %v876 = vsel %vm875, %v870, %v872
      %v877 = vsel %vm875, %v872, %v874
      %v880 = vsel %vm277, %v876, 0.0
      %v881 = vsel %vm278, %v877, 0.0
      %s882 = scalar_lea.vmem %s1, 48
      %v883 = vld [vmem:[%s882] sm:$0xff]
      %v885 = vsel %vm298, %v883, 0
      %v888 = vsel %vm302, %v880, 0
      %v891 = vsel %vm302, %v881, 0
      %893 = vmatprep.subr.mxu0 %v891
      %894 = vmatpush1.msra.mxu0 %v888
      %895 = vmatprep.subr.mxu0 0.0
      %896 = vmatpush1.msra.mxu0 0.0
      %897 = vmatprep.subr.mxu0 0.0
      %898 = vmatpush1.msra.mxu0 0.0
      %899 = vmatprep.subr.mxu0 0.0
      %900 = vmatpush1.msra.mxu0 0.0
      %901 = vmatprep.subr.mxu0 0.0
      %902 = vmatpush1.msra.mxu0 0.0
      %903 = vmatprep.subr.mxu0 0.0
      %904 = vmatpush1.msra.mxu0 0.0
      %905 = vmatprep.subr.mxu0 0.0
      %906 = vmatpush1.msra.mxu0 0.0
      %907 = vmatprep.subr.mxu0 0.0
      %908 = vmatpush1.msra.mxu0 0.0
      %909 = vmatprep.subr.mxu0 0.0
      %910 = vmatpush1.msra.mxu0 0.0
      %911 = vmatprep.subr.mxu0 0.0
      %912 = vmatpush1.msra.mxu0 0.0
      %913 = vmatprep.subr.mxu0 0.0
      %914 = vmatpush1.msra.mxu0 0.0
      %915 = vmatprep.subr.mxu0 0.0
      %916 = vmatpush1.msra.mxu0 0.0
      %917 = vmatprep.subr.mxu0 0.0
      %918 = vmatpush1.msra.mxu0 0.0
      %919 = vmatprep.subr.mxu0 0.0
      %920 = vmatpush1.msra.mxu0 0.0
      %921 = vmatprep.subr.mxu0 0.0
      %922 = vmatpush1.msra.mxu0 0.0
      %923 = vmatprep.subr.mxu0 0.0
      %924 = vmatpush1.msra.mxu0 0.0
      %925 = vmatprep.subr.mxu0 0.0
      %926 = vmatpush1.msra.mxu0 0.0
      %927 = vmatprep.subr.mxu0 0.0
      %928 = vmatpush1.msra.mxu0 0.0
      %929 = vmatprep.subr.mxu0 0.0
      %930 = vmatpush1.msra.mxu0 0.0
      %931 = vmatprep.subr.mxu0 0.0
      %932 = vmatpush1.msra.mxu0 0.0
      %933 = vmatprep.subr.mxu0 0.0
      %934 = vmatpush1.msra.mxu0 0.0
      %935 = vmatprep.subr.mxu0 0.0
      %936 = vmatpush1.msra.mxu0 0.0
      %937 = vmatprep.subr.mxu0 0.0
      %938 = vmatpush1.msra.mxu0 0.0
      %939 = vmatprep.subr.mxu0 0.0
      %940 = vmatpush1.msra.mxu0 0.0
      %941 = vmatprep.subr.mxu0 0.0
      %942 = vmatpush1.msra.mxu0 0.0
      %943 = vmatprep.subr.mxu0 0.0
      %944 = vmatpush1.msra.mxu0 0.0
      %945 = vmatprep.subr.mxu0 0.0
      %946 = vmatpush1.msra.mxu0 0.0
      %947 = vmatprep.subr.mxu0 0.0
      %948 = vmatpush1.msra.mxu0 0.0
      %949 = vmatprep.subr.mxu0 0.0
      %950 = vmatpush1.msra.mxu0 0.0
      %951 = vmatprep.subr.mxu0 0.0
      %952 = vmatpush1.msra.mxu0 0.0
      %953 = vmatprep.subr.mxu0 0.0
      %954 = vmatpush1.msra.mxu0 0.0
      %955 = vmatprep.subr.mxu0 0.0
      %956 = vmatpush1.msra.mxu0 0.0
      %957 = vmatprep.mubr.f32.mxu0 0.0
      %958 = vmatmul.mubr.f32.gmra.mrb[0].mxu0 %v885
      %v959 = vpop.f32.mrb[0].mxu0
      %v960 = vadd.f32 0.0, %v959
      %v961 = vpop.f32.mrb[0].mxu0
      %v962 = vadd.f32 0.0, %v961
      %963 = vdwg.mxu0
      %v964 = vadd.f32 %v862, %v960
      %v965 = vadd.f32 %v863, %v962
      %v966 = vld [vmem:[#allocation2] sm:$0xff]
      %v967 = vld [vmem:[#allocation2 + $0x8] sm:$0xf]
      %s968 = scalar_lea.vmem %s1, 56
      %v969 = vld [vmem:[%s968] sm:$0xff]
      %v972 = vcombine.high %v966, %v966
      %973 = vrot.lane.b32.xlu0 %v966, 95
      %v974 = vpop.permute.xlu0 %973
      %975 = vrot.lane.b32.xlu0 %v972, 95
      %v976 = vpop.permute.xlu0 %975
      %977 = vrot.lane.b32.xlu0 %v967, 95
      %v978 = vpop.permute.xlu0 %977
      %vm979 = vcmask 777216
      %v980 = vsel %vm979, %v974, %v976
      %v981 = vsel %vm979, %v976, %v978
      %v983 = vsel %vm298, %v969, 0
      %v985 = vsel %vm302, %v980, 0
      %v987 = vsel %vm302, %v981, 0
      %989 = vmatprep.subr.mxu0 %v987
      %990 = vmatpush1.msra.mxu0 %v985
      %991 = vmatprep.subr.mxu0 0.0
      %992 = vmatpush1.msra.mxu0 0.0
      %993 = vmatprep.subr.mxu0 0.0
      %994 = vmatpush1.msra.mxu0 0.0
      %995 = vmatprep.subr.mxu0 0.0
      %996 = vmatpush1.msra.mxu0 0.0
      %997 = vmatprep.subr.mxu0 0.0
      %998 = vmatpush1.msra.mxu0 0.0
      %999 = vmatprep.subr.mxu0 0.0
      %1000 = vmatpush1.msra.mxu0 0.0
      %1001 = vmatprep.subr.mxu0 0.0
      %1002 = vmatpush1.msra.mxu0 0.0
      %1003 = vmatprep.subr.mxu0 0.0
      %1004 = vmatpush1.msra.mxu0 0.0
      %1005 = vmatprep.subr.mxu0 0.0
      %1006 = vmatpush1.msra.mxu0 0.0
      %1007 = vmatprep.subr.mxu0 0.0
      %1008 = vmatpush1.msra.mxu0 0.0
      %1009 = vmatprep.subr.mxu0 0.0
      %1010 = vmatpush1.msra.mxu0 0.0
      %1011 = vmatprep.subr.mxu0 0.0
      %1012 = vmatpush1.msra.mxu0 0.0
      %1013 = vmatprep.subr.mxu0 0.0
      %1014 = vmatpush1.msra.mxu0 0.0
      %1015 = vmatprep.subr.mxu0 0.0
      %1016 = vmatpush1.msra.mxu0 0.0
      %1017 = vmatprep.subr.mxu0 0.0
      %1018 = vmatpush1.msra.mxu0 0.0
      %1019 = vmatprep.subr.mxu0 0.0
      %1020 = vmatpush1.msra.mxu0 0.0
      %1021 = vmatprep.subr.mxu0 0.0
      %1022 = vmatpush1.msra.mxu0 0.0
      %1023 = vmatprep.subr.mxu0 0.0
      %1024 = vmatpush1.msra.mxu0 0.0
      %1025 = vmatprep.subr.mxu0 0.0
      %1026 = vmatpush1.msra.mxu0 0.0
      %1027 = vmatprep.subr.mxu0 0.0
      %1028 = vmatpush1.msra.mxu0 0.0
      %1029 = vmatprep.subr.mxu0 0.0
      %1030 = vmatpush1.msra.mxu0 0.0
      %1031 = vmatprep.subr.mxu0 0.0
      %1032 = vmatpush1.msra.mxu0 0.0
      %1033 = vmatprep.subr.mxu0 0.0
      %1034 = vmatpush1.msra.mxu0 0.0
      %1035 = vmatprep.subr.mxu0 0.0
      %1036 = vmatpush1.msra.mxu0 0.0
      %1037 = vmatprep.subr.mxu0 0.0
      %1038 = vmatpush1.msra.mxu0 0.0
      %1039 = vmatprep.subr.mxu0 0.0
      %1040 = vmatpush1.msra.mxu0 0.0
      %1041 = vmatprep.subr.mxu0 0.0
      %1042 = vmatpush1.msra.mxu0 0.0
      %1043 = vmatprep.subr.mxu0 0.0
      %1044 = vmatpush1.msra.mxu0 0.0
      %1045 = vmatprep.subr.mxu0 0.0
      %1046 = vmatpush1.msra.mxu0 0.0
      %1047 = vmatprep.subr.mxu0 0.0
      %1048 = vmatpush1.msra.mxu0 0.0
      %1049 = vmatprep.subr.mxu0 0.0
      %1050 = vmatpush1.msra.mxu0 0.0
      %1051 = vmatprep.subr.mxu0 0.0
      %1052 = vmatpush1.msra.mxu0 0.0
      %1053 = vmatprep.mubr.f32.mxu0 0.0
      %1054 = vmatmul.mubr.f32.gmra.mrb[0].mxu0 %v983
      %v1055 = vpop.f32.mrb[0].mxu0
      %v1056 = vadd.f32 0.0, %v1055
      %v1057 = vpop.f32.mrb[0].mxu0
      %v1058 = vadd.f32 0.0, %v1057
      %1059 = vdwg.mxu0
      %v1060 = vadd.f32 %v964, %v1056
      %v1061 = vadd.f32 %v965, %v1058
      %v1062 = vld [vmem:[#allocation2] sm:$0xff]
      %v1063 = vld [vmem:[#allocation2 + $0x8] sm:$0xf]
      %v1066 = vcombine.high %v1062, %v1062
      %1067 = vrot.lane.b32.xlu0 %v1062, 94
      %v1068 = vpop.permute.xlu0 %1067
      %1069 = vrot.lane.b32.xlu0 %v1066, 94
      %v1070 = vpop.permute.xlu0 %1069
      %1071 = vrot.lane.b32.xlu0 %v1063, 94
      %v1072 = vpop.permute.xlu0 %1071
      %vm1073 = vcmask 769024
      %v1074 = vsel %vm1073, %v1068, %v1070
      %v1075 = vsel %vm1073, %v1070, %v1072
      %v1078 = vsel %vm462, %v1074, 0.0
      %v1079 = vsel %vm463, %v1075, 0.0
      %s1080 = scalar_lea.vmem %s1, 64
      %v1081 = vld [vmem:[%s1080] sm:$0xff]
      %v1083 = vsel %vm298, %v1081, 0
      %v1086 = vsel %vm302, %v1078, 0
      %v1089 = vsel %vm302, %v1079, 0
      %1091 = vmatprep.subr.mxu0 %v1089
      %1092 = vmatpush1.msra.mxu0 %v1086
      %1093 = vmatprep.subr.mxu0 0.0
      %1094 = vmatpush1.msra.mxu0 0.0
      %1095 = vmatprep.subr.mxu0 0.0
      %1096 = vmatpush1.msra.mxu0 0.0
      %1097 = vmatprep.subr.mxu0 0.0
      %1098 = vmatpush1.msra.mxu0 0.0
      %1099 = vmatprep.subr.mxu0 0.0
      %1100 = vmatpush1.msra.mxu0 0.0
      %1101 = vmatprep.subr.mxu0 0.0
      %1102 = vmatpush1.msra.mxu0 0.0
      %1103 = vmatprep.subr.mxu0 0.0
      %1104 = vmatpush1.msra.mxu0 0.0
      %1105 = vmatprep.subr.mxu0 0.0
      %1106 = vmatpush1.msra.mxu0 0.0
      %1107 = vmatprep.subr.mxu0 0.0
      %1108 = vmatpush1.msra.mxu0 0.0
      %1109 = vmatprep.subr.mxu0 0.0
      %1110 = vmatpush1.msra.mxu0 0.0
      %1111 = vmatprep.subr.mxu0 0.0
      %1112 = vmatpush1.msra.mxu0 0.0
      %1113 = vmatprep.subr.mxu0 0.0
      %1114 = vmatpush1.msra.mxu0 0.0
      %1115 = vmatprep.subr.mxu0 0.0
      %1116 = vmatpush1.msra.mxu0 0.0
      %1117 = vmatprep.subr.mxu0 0.0
      %1118 = vmatpush1.msra.mxu0 0.0
      %1119 = vmatprep.subr.mxu0 0.0
      %1120 = vmatpush1.msra.mxu0 0.0
      %1121 = vmatprep.subr.mxu0 0.0
      %1122 = vmatpush1.msra.mxu0 0.0
      %1123 = vmatprep.subr.mxu0 0.0
      %1124 = vmatpush1.msra.mxu0 0.0
      %1125 = vmatprep.subr.mxu0 0.0
      %1126 = vmatpush1.msra.mxu0 0.0
      %1127 = vmatprep.subr.mxu0 0.0
      %1128 = vmatpush1.msra.mxu0 0.0
      %1129 = vmatprep.subr.mxu0 0.0
      %1130 = vmatpush1.msra.mxu0 0.0
      %1131 = vmatprep.subr.mxu0 0.0
      %1132 = vmatpush1.msra.mxu0 0.0
      %1133 = vmatprep.subr.mxu0 0.0
      %1134 = vmatpush1.msra.mxu0 0.0
      %1135 = vmatprep.subr.mxu0 0.0
      %1136 = vmatpush1.msra.mxu0 0.0
      %1137 = vmatprep.subr.mxu0 0.0
      %1138 = vmatpush1.msra.mxu0 0.0
      %1139 = vmatprep.subr.mxu0 0.0
      %1140 = vmatpush1.msra.mxu0 0.0
      %1141 = vmatprep.subr.mxu0 0.0
      %1142 = vmatpush1.msra.mxu0 0.0
      %1143 = vmatprep.subr.mxu0 0.0
      %1144 = vmatpush1.msra.mxu0 0.0
      %1145 = vmatprep.subr.mxu0 0.0
      %1146 = vmatpush1.msra.mxu0 0.0
      %1147 = vmatprep.subr.mxu0 0.0
      %1148 = vmatpush1.msra.mxu0 0.0
      %1149 = vmatprep.subr.mxu0 0.0
      %1150 = vmatpush1.msra.mxu0 0.0
      %1151 = vmatprep.subr.mxu0 0.0
      %1152 = vmatpush1.msra.mxu0 0.0
      %1153 = vmatprep.subr.mxu0 0.0
      %1154 = vmatpush1.msra.mxu0 0.0
      %1155 = vmatprep.mubr.f32.mxu0 0.0
      %1156 = vmatmul.mubr.f32.gmra.mrb[0].mxu0 %v1083
      %v1157 = vpop.f32.mrb[0].mxu0
      %v1158 = vadd.f32 0.0, %v1157
      %v1159 = vpop.f32.mrb[0].mxu0
      %v1160 = vadd.f32 0.0, %v1159
      %1161 = vdwg.mxu0
      %v1162 = vadd.f32 %v1060, %v1158
      %v1163 = vadd.f32 %v1061, %v1160
      %v1164 = vld [vmem:[%s2] sm:$0xff]
      %1166 = vset.pattern.permute.xlu0 0
      %1167 = vperm.xlu0 %1166, %v1164
      %v1168 = vpop.permute.xlu0 %1167
      %v1170 = vadd.f32 %v1162, %v1168
      %v1171 = vadd.f32 %v1163, %v1168
      %v1172 = vmax.f32 %v1170, 0.0
      %v1173 = vmax.f32 %v1171, 0.0
      %1174 = vst.msk [vmem:[#allocation3] sm:$0xff] %vm265, 0.0
      %vm1175 = vcmask 277640
      %1176 = vst.msk [vmem:[#allocation3 + $0x10] sm:$0xff] %vm1175, 0.0
      %1179 = vrot.lane.b32.xlu0 %v1172, 17
      %v1180 = vpop.permute.xlu0 %1179
      %1181 = vrot.lane.b32.xlu0 %v1173, 17
      %v1182 = vpop.permute.xlu0 %1181
      %v1183 = vsel %vm265, %v1180, %v1182
      %vm1187 = vcmask 1047688
      %1188 = vst.msk [vmem:[#allocation3] sm:$0xff] %vm1187, %v1180
      %1189 = vst [vmem:[#allocation3 + $0x8] sm:$0xff] %v1183
      %1190 = vst.msk [vmem:[#allocation3 + $0x10] sm:$0xff] %vm265, %v1182
      %v1191 = vld [vmem:[#allocation3] sm:$0xff]
      %v1192 = vld [vmem:[#allocation3 + $0x8] sm:$0xff]
      %v1193 = vsel %vm277, %v1191, 0.0
      %v1194 = vsel %vm278, %v1192, 0.0
      %v1195 = vld [vmem:[%s3] sm:$0xff]
      %v1196 = vld [vmem:[#allocation3 + $0x10] sm:$0xff]
      %s1197 = scalar_lea.vmem %s3, 8
      %v1198 = vld [vmem:[%s1197] sm:$0xff]
      %1202 = vrot.lane.b32.xlu0 %v1191, 127
      %v1203 = vpop.permute.xlu0 %1202
      %1204 = vrot.lane.b32.xlu0 %v1192, 127
      %v1205 = vpop.permute.xlu0 %1204
      %1206 = vrot.lane.b32.xlu0 %v1196, 127
      %v1207 = vpop.permute.xlu0 %1206
      %v1208 = vsel %vm295, %v1203, %v1205
      %v1209 = vsel %vm295, %v1205, %v1207
      %vm1212 = vcmask 64512
      %v1214 = vsel %vm1212, %v1198, 0
      %1216 = vmatprep.subr.mxu0 %v1209
      %1217 = vmatpush1.msra.mxu0 %v1208
      %1218 = vmatprep.subr.mxu0 0.0
      %1219 = vmatpush1.msra.mxu0 0.0
      %1220 = vmatprep.subr.mxu0 0.0
      %1221 = vmatpush1.msra.mxu0 0.0
      %1222 = vmatprep.subr.mxu0 0.0
      %1223 = vmatpush1.msra.mxu0 0.0
      %1224 = vmatprep.subr.mxu0 0.0
      %1225 = vmatpush1.msra.mxu0 0.0
      %1226 = vmatprep.subr.mxu0 0.0
      %1227 = vmatpush1.msra.mxu0 0.0
      %1228 = vmatprep.subr.mxu0 0.0
      %1229 = vmatpush1.msra.mxu0 0.0
      %1230 = vmatprep.subr.mxu0 0.0
      %1231 = vmatpush1.msra.mxu0 0.0
      %1232 = vmatprep.subr.mxu0 0.0
      %1233 = vmatpush1.msra.mxu0 0.0
      %1234 = vmatprep.subr.mxu0 0.0
      %1235 = vmatpush1.msra.mxu0 0.0
      %1236 = vmatprep.subr.mxu0 0.0
      %1237 = vmatpush1.msra.mxu0 0.0
      %1238 = vmatprep.subr.mxu0 0.0
      %1239 = vmatpush1.msra.mxu0 0.0
      %1240 = vmatprep.subr.mxu0 0.0
      %1241 = vmatpush1.msra.mxu0 0.0
      %1242 = vmatprep.subr.mxu0 0.0
      %1243 = vmatpush1.msra.mxu0 0.0
      %1244 = vmatprep.subr.mxu0 0.0
      %1245 = vmatpush1.msra.mxu0 0.0
      %1246 = vmatprep.subr.mxu0 0.0
      %1247 = vmatpush1.msra.mxu0 0.0
      %1248 = vmatprep.subr.mxu0 0.0
      %1249 = vmatpush1.msra.mxu0 0.0
      %1250 = vmatprep.subr.mxu0 0.0
      %1251 = vmatpush1.msra.mxu0 0.0
      %1252 = vmatprep.subr.mxu0 0.0
      %1253 = vmatpush1.msra.mxu0 0.0
      %1254 = vmatprep.subr.mxu0 0.0
      %1255 = vmatpush1.msra.mxu0 0.0
      %1256 = vmatprep.subr.mxu0 0.0
      %1257 = vmatpush1.msra.mxu0 0.0
      %1258 = vmatprep.subr.mxu0 0.0
      %1259 = vmatpush1.msra.mxu0 0.0
      %1260 = vmatprep.subr.mxu0 0.0
      %1261 = vmatpush1.msra.mxu0 0.0
      %1262 = vmatprep.subr.mxu0 0.0
      %1263 = vmatpush1.msra.mxu0 0.0
      %1264 = vmatprep.subr.mxu0 0.0
      %1265 = vmatpush1.msra.mxu0 0.0
      %1266 = vmatprep.subr.mxu0 0.0
      %1267 = vmatpush1.msra.mxu0 0.0
      %1268 = vmatprep.subr.mxu0 0.0
      %1269 = vmatpush1.msra.mxu0 0.0
      %1270 = vmatprep.subr.mxu0 0.0
      %1271 = vmatpush1.msra.mxu0 0.0
      %1272 = vmatprep.subr.mxu0 0.0
      %1273 = vmatpush1.msra.mxu0 0.0
      %1274 = vmatprep.subr.mxu0 0.0
      %1275 = vmatpush1.msra.mxu0 0.0
      %1276 = vmatprep.subr.mxu0 0.0
      %1277 = vmatpush1.msra.mxu0 0.0
      %1278 = vmatprep.subr.mxu0 0.0
      %1279 = vmatpush1.msra.mxu0 0.0
      %1280 = vmatprep.mubr.f32.mxu0 0.0
      %1281 = vmatmul.mubr.f32.gmra.mrb[0].mxu0 %v1214
      %v1282 = vpop.f32.mrb[0].mxu0
      %v1283 = vadd.f32 0.0, %v1282
      %v1284 = vpop.f32.mrb[0].mxu0
      %v1285 = vadd.f32 0.0, %v1284
      %1286 = vdwg.mxu0
      %v1288 = vsel %vm1212, %v1195, 0
      %1290 = vmatprep.subr.mxu0 %v1194
      %1291 = vmatpush1.msra.mxu0 %v1193
      %1292 = vmatprep.subr.mxu0 0.0
      %1293 = vmatpush1.msra.mxu0 0.0
      %1294 = vmatprep.subr.mxu0 0.0
      %1295 = vmatpush1.msra.mxu0 0.0
      %1296 = vmatprep.subr.mxu0 0.0
      %1297 = vmatpush1.msra.mxu0 0.0
      %1298 = vmatprep.subr.mxu0 0.0
      %1299 = vmatpush1.msra.mxu0 0.0
      %1300 = vmatprep.subr.mxu0 0.0
      %1301 = vmatpush1.msra.mxu0 0.0
      %1302 = vmatprep.subr.mxu0 0.0
      %1303 = vmatpush1.msra.mxu0 0.0
      %1304 = vmatprep.subr.mxu0 0.0
      %1305 = vmatpush1.msra.mxu0 0.0
      %1306 = vmatprep.subr.mxu0 0.0
      %1307 = vmatpush1.msra.mxu0 0.0
      %1308 = vmatprep.subr.mxu0 0.0
      %1309 = vmatpush1.msra.mxu0 0.0
      %1310 = vmatprep.subr.mxu0 0.0
      %1311 = vmatpush1.msra.mxu0 0.0
      %1312 = vmatprep.subr.mxu0 0.0
      %1313 = vmatpush1.msra.mxu0 0.0
      %1314 = vmatprep.subr.mxu0 0.0
      %1315 = vmatpush1.msra.mxu0 0.0
      %1316 = vmatprep.subr.mxu0 0.0
      %1317 = vmatpush1.msra.mxu0 0.0
      %1318 = vmatprep.subr.mxu0 0.0
      %1319 = vmatpush1.msra.mxu0 0.0
      %1320 = vmatprep.subr.mxu0 0.0
      %1321 = vmatpush1.msra.mxu0 0.0
      %1322 = vmatprep.subr.mxu0 0.0
      %1323 = vmatpush1.msra.mxu0 0.0
      %1324 = vmatprep.subr.mxu0 0.0
      %1325 = vmatpush1.msra.mxu0 0.0
      %1326 = vmatprep.subr.mxu0 0.0
      %1327 = vmatpush1.msra.mxu0 0.0
      %1328 = vmatprep.subr.mxu0 0.0
      %1329 = vmatpush1.msra.mxu0 0.0
      %1330 = vmatprep.subr.mxu0 0.0
      %1331 = vmatpush1.msra.mxu0 0.0
      %1332 = vmatprep.subr.mxu0 0.0
      %1333 = vmatpush1.msra.mxu0 0.0
      %1334 = vmatprep.subr.mxu0 0.0
      %1335 = vmatpush1.msra.mxu0 0.0
      %1336 = vmatprep.subr.mxu0 0.0
      %1337 = vmatpush1.msra.mxu0 0.0
      %1338 = vmatprep.subr.mxu0 0.0
      %1339 = vmatpush1.msra.mxu0 0.0
      %1340 = vmatprep.subr.mxu0 0.0
      %1341 = vmatpush1.msra.mxu0 0.0
      %1342 = vmatprep.subr.mxu0 0.0
      %1343 = vmatpush1.msra.mxu0 0.0
      %1344 = vmatprep.subr.mxu0 0.0
      %1345 = vmatpush1.msra.mxu0 0.0
      %1346 = vmatprep.subr.mxu0 0.0
      %1347 = vmatpush1.msra.mxu0 0.0
      %1348 = vmatprep.subr.mxu0 0.0
      %1349 = vmatpush1.msra.mxu0 0.0
      %1350 = vmatprep.subr.mxu0 0.0
      %1351 = vmatpush1.msra.mxu0 0.0
      %1352 = vmatprep.subr.mxu0 0.0
      %1353 = vmatpush1.msra.mxu0 0.0
      %1354 = vmatprep.mubr.f32.mxu0 0.0
      %1355 = vmatmul.mubr.f32.gmra.mrb[0].mxu0 %v1288
      %v1356 = vpop.f32.mrb[0].mxu0
      %v1357 = vadd.f32 %v1283, %v1356
      %v1358 = vpop.f32.mrb[0].mxu0
      %v1359 = vadd.f32 %v1285, %v1358
      %1360 = vdwg.mxu0
      %1361 = vrot.lane.b32.xlu0 %v1191, 126
      %v1362 = vpop.permute.xlu0 %1361
      %1363 = vrot.lane.b32.xlu0 %v1192, 126
      %v1364 = vpop.permute.xlu0 %1363
      %1365 = vrot.lane.b32.xlu0 %v1196, 126
      %v1366 = vpop.permute.xlu0 %1365
      %v1367 = vsel %vm473, %v1362, %v1364
      %v1368 = vsel %vm473, %v1364, %v1366
      %v1371 = vsel %vm462, %v1367, 0.0
      %v1372 = vsel %vm463, %v1368, 0.0
      %s1373 = scalar_lea.vmem %s3, 16
      %v1374 = vld [vmem:[%s1373] sm:$0xff]
      %v1376 = vsel %vm1212, %v1374, 0
      %1378 = vmatprep.subr.mxu0 %v1372
      %1379 = vmatpush1.msra.mxu0 %v1371
      %1380 = vmatprep.subr.mxu0 0.0
      %1381 = vmatpush1.msra.mxu0 0.0
      %1382 = vmatprep.subr.mxu0 0.0
      %1383 = vmatpush1.msra.mxu0 0.0
      %1384 = vmatprep.subr.mxu0 0.0
      %1385 = vmatpush1.msra.mxu0 0.0
      %1386 = vmatprep.subr.mxu0 0.0
      %1387 = vmatpush1.msra.mxu0 0.0
      %1388 = vmatprep.subr.mxu0 0.0
      %1389 = vmatpush1.msra.mxu0 0.0
      %1390 = vmatprep.subr.mxu0 0.0
      %1391 = vmatpush1.msra.mxu0 0.0
      %1392 = vmatprep.subr.mxu0 0.0
      %1393 = vmatpush1.msra.mxu0 0.0
      %1394 = vmatprep.subr.mxu0 0.0
      %1395 = vmatpush1.msra.mxu0 0.0
      %1396 = vmatprep.subr.mxu0 0.0
      %1397 = vmatpush1.msra.mxu0 0.0
      %1398 = vmatprep.subr.mxu0 0.0
      %1399 = vmatpush1.msra.mxu0 0.0
      %1400 = vmatprep.subr.mxu0 0.0
      %1401 = vmatpush1.msra.mxu0 0.0
      %1402 = vmatprep.subr.mxu0 0.0
      %1403 = vmatpush1.msra.mxu0 0.0
      %1404 = vmatprep.subr.mxu0 0.0
      %1405 = vmatpush1.msra.mxu0 0.0
      %1406 = vmatprep.subr.mxu0 0.0
      %1407 = vmatpush1.msra.mxu0 0.0
      %1408 = vmatprep.subr.mxu0 0.0
      %1409 = vmatpush1.msra.mxu0 0.0
      %1410 = vmatprep.subr.mxu0 0.0
      %1411 = vmatpush1.msra.mxu0 0.0
      %1412 = vmatprep.subr.mxu0 0.0
      %1413 = vmatpush1.msra.mxu0 0.0
      %1414 = vmatprep.subr.mxu0 0.0
      %1415 = vmatpush1.msra.mxu0 0.0
      %1416 = vmatprep.subr.mxu0 0.0
      %1417 = vmatpush1.msra.mxu0 0.0
      %1418 = vmatprep.subr.mxu0 0.0
      %1419 = vmatpush1.msra.mxu0 0.0
      %1420 = vmatprep.subr.mxu0 0.0
      %1421 = vmatpush1.msra.mxu0 0.0
      %1422 = vmatprep.subr.mxu0 0.0
      %1423 = vmatpush1.msra.mxu0 0.0
      %1424 = vmatprep.subr.mxu0 0.0
      %1425 = vmatpush1.msra.mxu0 0.0
      %1426 = vmatprep.subr.mxu0 0.0
      %1427 = vmatpush1.msra.mxu0 0.0
      %1428 = vmatprep.subr.mxu0 0.0
      %1429 = vmatpush1.msra.mxu0 0.0
      %1430 = vmatprep.subr.mxu0 0.0
      %1431 = vmatpush1.msra.mxu0 0.0
      %1432 = vmatprep.subr.mxu0 0.0
      %1433 = vmatpush1.msra.mxu0 0.0
      %1434 = vmatprep.subr.mxu0 0.0
      %1435 = vmatpush1.msra.mxu0 0.0
      %1436 = vmatprep.subr.mxu0 0.0
      %1437 = vmatpush1.msra.mxu0 0.0
      %1438 = vmatprep.subr.mxu0 0.0
      %1439 = vmatpush1.msra.mxu0 0.0
      %1440 = vmatprep.subr.mxu0 0.0
      %1441 = vmatpush1.msra.mxu0 0.0
      %1442 = vmatprep.mubr.f32.mxu0 0.0
      %1443 = vmatmul.mubr.f32.gmra.mrb[0].mxu0 %v1376
      %v1444 = vpop.f32.mrb[0].mxu0
      %v1445 = vadd.f32 0.0, %v1444
      %v1446 = vpop.f32.mrb[0].mxu0
      %v1447 = vadd.f32 0.0, %v1446
      %1448 = vdwg.mxu0
      %v1449 = vadd.f32 %v1357, %v1445
      %v1450 = vadd.f32 %v1359, %v1447
      %1451 = vrot.lane.b32.xlu0 %v1191, 112
      %v1452 = vpop.permute.xlu0 %1451
      %1453 = vrot.lane.b32.xlu0 %v1192, 112
      %v1454 = vpop.permute.xlu0 %1453
      %1455 = vrot.lane.b32.xlu0 %v1196, 112
      %v1456 = vpop.permute.xlu0 %1455
      %v1457 = vsel %vm575, %v1452, %v1454
      %v1458 = vsel %vm575, %v1454, %v1456
      %v1461 = vsel %vm277, %v1457, 0.0
      %v1462 = vsel %vm278, %v1458, 0.0
      %s1463 = scalar_lea.vmem %s3, 24
      %v1464 = vld [vmem:[%s1463] sm:$0xff]
      %v1466 = vsel %vm1212, %v1464, 0
      %1468 = vmatprep.subr.mxu0 %v1462
      %1469 = vmatpush1.msra.mxu0 %v1461
      %1470 = vmatprep.subr.mxu0 0.0
      %1471 = vmatpush1.msra.mxu0 0.0
      %1472 = vmatprep.subr.mxu0 0.0
      %1473 = vmatpush1.msra.mxu0 0.0
      %1474 = vmatprep.subr.mxu0 0.0
      %1475 = vmatpush1.msra.mxu0 0.0
      %1476 = vmatprep.subr.mxu0 0.0
      %1477 = vmatpush1.msra.mxu0 0.0
      %1478 = vmatprep.subr.mxu0 0.0
      %1479 = vmatpush1.msra.mxu0 0.0
      %1480 = vmatprep.subr.mxu0 0.0
      %1481 = vmatpush1.msra.mxu0 0.0
      %1482 = vmatprep.subr.mxu0 0.0
      %1483 = vmatpush1.msra.mxu0 0.0
      %1484 = vmatprep.subr.mxu0 0.0
      %1485 = vmatpush1.msra.mxu0 0.0
      %1486 = vmatprep.subr.mxu0 0.0
      %1487 = vmatpush1.msra.mxu0 0.0
      %1488 = vmatprep.subr.mxu0 0.0
      %1489 = vmatpush1.msra.mxu0 0.0
      %1490 = vmatprep.subr.mxu0 0.0
      %1491 = vmatpush1.msra.mxu0 0.0
      %1492 = vmatprep.subr.mxu0 0.0
      %1493 = vmatpush1.msra.mxu0 0.0
      %1494 = vmatprep.subr.mxu0 0.0
      %1495 = vmatpush1.msra.mxu0 0.0
      %1496 = vmatprep.subr.mxu0 0.0
      %1497 = vmatpush1.msra.mxu0 0.0
      %1498 = vmatprep.subr.mxu0 0.0
      %1499 = vmatpush1.msra.mxu0 0.0
      %1500 = vmatprep.subr.mxu0 0.0
      %1501 = vmatpush1.msra.mxu0 0.0
      %1502 = vmatprep.subr.mxu0 0.0
      %1503 = vmatpush1.msra.mxu0 0.0
      %1504 = vmatprep.subr.mxu0 0.0
      %1505 = vmatpush1.msra.mxu0 0.0
      %1506 = vmatprep.subr.mxu0 0.0
      %1507 = vmatpush1.msra.mxu0 0.0
      %1508 = vmatprep.subr.mxu0 0.0
      %1509 = vmatpush1.msra.mxu0 0.0
      %1510 = vmatprep.subr.mxu0 0.0
      %1511 = vmatpush1.msra.mxu0 0.0
      %1512 = vmatprep.subr.mxu0 0.0
      %1513 = vmatpush1.msra.mxu0 0.0
      %1514 = vmatprep.subr.mxu0 0.0
      %1515 = vmatpush1.msra.mxu0 0.0
      %1516 = vmatprep.subr.mxu0 0.0
      %1517 = vmatpush1.msra.mxu0 0.0
      %1518 = vmatprep.subr.mxu0 0.0
      %1519 = vmatpush1.msra.mxu0 0.0
      %1520 = vmatprep.subr.mxu0 0.0
      %1521 = vmatpush1.msra.mxu0 0.0
      %1522 = vmatprep.subr.mxu0 0.0
      %1523 = vmatpush1.msra.mxu0 0.0
      %1524 = vmatprep.subr.mxu0 0.0
      %1525 = vmatpush1.msra.mxu0 0.0
      %1526 = vmatprep.subr.mxu0 0.0
      %1527 = vmatpush1.msra.mxu0 0.0
      %1528 = vmatprep.subr.mxu0 0.0
      %1529 = vmatpush1.msra.mxu0 0.0
      %1530 = vmatprep.subr.mxu0 0.0
      %1531 = vmatpush1.msra.mxu0 0.0
      %1532 = vmatprep.mubr.f32.mxu0 0.0
      %1533 = vmatmul.mubr.f32.gmra.mrb[0].mxu0 %v1466
      %v1534 = vpop.f32.mrb[0].mxu0
      %v1535 = vadd.f32 0.0, %v1534
      %v1536 = vpop.f32.mrb[0].mxu0
      %v1537 = vadd.f32 0.0, %v1536
      %1538 = vdwg.mxu0
      %v1539 = vadd.f32 %v1449, %v1535
      %v1540 = vadd.f32 %v1450, %v1537
      %s1541 = scalar_lea.vmem %s3, 32
      %v1542 = vld [vmem:[%s1541] sm:$0xff]
      %1543 = vrot.lane.b32.xlu0 %v1191, 111
      %v1544 = vpop.permute.xlu0 %1543
      %1545 = vrot.lane.b32.xlu0 %v1192, 111
      %v1546 = vpop.permute.xlu0 %1545
      %1547 = vrot.lane.b32.xlu0 %v1196, 111
      %v1548 = vpop.permute.xlu0 %1547
      %v1549 = vsel %vm679, %v1544, %v1546
      %v1550 = vsel %vm679, %v1546, %v1548
      %v1554 = vsel %vm1212, %v1542, 0
      %1556 = vmatprep.subr.mxu0 %v1550
      %1557 = vmatpush1.msra.mxu0 %v1549
      %1558 = vmatprep.subr.mxu0 0.0
      %1559 = vmatpush1.msra.mxu0 0.0
      %1560 = vmatprep.subr.mxu0 0.0
      %1561 = vmatpush1.msra.mxu0 0.0
      %1562 = vmatprep.subr.mxu0 0.0
      %1563 = vmatpush1.msra.mxu0 0.0
      %1564 = vmatprep.subr.mxu0 0.0
      %1565 = vmatpush1.msra.mxu0 0.0
      %1566 = vmatprep.subr.mxu0 0.0
      %1567 = vmatpush1.msra.mxu0 0.0
      %1568 = vmatprep.subr.mxu0 0.0
      %1569 = vmatpush1.msra.mxu0 0.0
      %1570 = vmatprep.subr.mxu0 0.0
      %1571 = vmatpush1.msra.mxu0 0.0
      %1572 = vmatprep.subr.mxu0 0.0
      %1573 = vmatpush1.msra.mxu0 0.0
      %1574 = vmatprep.subr.mxu0 0.0
      %1575 = vmatpush1.msra.mxu0 0.0
      %1576 = vmatprep.subr.mxu0 0.0
      %1577 = vmatpush1.msra.mxu0 0.0
      %1578 = vmatprep.subr.mxu0 0.0
      %1579 = vmatpush1.msra.mxu0 0.0
      %1580 = vmatprep.subr.mxu0 0.0
      %1581 = vmatpush1.msra.mxu0 0.0
      %1582 = vmatprep.subr.mxu0 0.0
      %1583 = vmatpush1.msra.mxu0 0.0
      %1584 = vmatprep.subr.mxu0 0.0
      %1585 = vmatpush1.msra.mxu0 0.0
      %1586 = vmatprep.subr.mxu0 0.0
      %1587 = vmatpush1.msra.mxu0 0.0
      %1588 = vmatprep.subr.mxu0 0.0
      %1589 = vmatpush1.msra.mxu0 0.0
      %1590 = vmatprep.subr.mxu0 0.0
      %1591 = vmatpush1.msra.mxu0 0.0
      %1592 = vmatprep.subr.mxu0 0.0
      %1593 = vmatpush1.msra.mxu0 0.0
      %1594 = vmatprep.subr.mxu0 0.0
      %1595 = vmatpush1.msra.mxu0 0.0
      %1596 = vmatprep.subr.mxu0 0.0
      %1597 = vmatpush1.msra.mxu0 0.0
      %1598 = vmatprep.subr.mxu0 0.0
      %1599 = vmatpush1.msra.mxu0 0.0
      %1600 = vmatprep.subr.mxu0 0.0
      %1601 = vmatpush1.msra.mxu0 0.0
      %1602 = vmatprep.subr.mxu0 0.0
      %1603 = vmatpush1.msra.mxu0 0.0
      %1604 = vmatprep.subr.mxu0 0.0
      %1605 = vmatpush1.msra.mxu0 0.0
      %1606 = vmatprep.subr.mxu0 0.0
      %1607 = vmatpush1.msra.mxu0 0.0
      %1608 = vmatprep.subr.mxu0 0.0
      %1609 = vmatpush1.msra.mxu0 0.0
      %1610 = vmatprep.subr.mxu0 0.0
      %1611 = vmatpush1.msra.mxu0 0.0
      %1612 = vmatprep.subr.mxu0 0.0
      %1613 = vmatpush1.msra.mxu0 0.0
      %1614 = vmatprep.subr.mxu0 0.0
      %1615 = vmatpush1.msra.mxu0 0.0
      %1616 = vmatprep.subr.mxu0 0.0
      %1617 = vmatpush1.msra.mxu0 0.0
      %1618 = vmatprep.subr.mxu0 0.0
      %1619 = vmatpush1.msra.mxu0 0.0
      %1620 = vmatprep.mubr.f32.mxu0 0.0
      %1621 = vmatmul.mubr.f32.gmra.mrb[0].mxu0 %v1554
      %v1622 = vpop.f32.mrb[0].mxu0
      %v1623 = vadd.f32 0.0, %v1622
      %v1624 = vpop.f32.mrb[0].mxu0
      %v1625 = vadd.f32 0.0, %v1624
      %1626 = vdwg.mxu0
      %v1627 = vadd.f32 %v1539, %v1623
      %v1628 = vadd.f32 %v1540, %v1625
      %1629 = vrot.lane.b32.xlu0 %v1191, 110
      %v1630 = vpop.permute.xlu0 %1629
      %1631 = vrot.lane.b32.xlu0 %v1192, 110
      %v1632 = vpop.permute.xlu0 %1631
      %1633 = vrot.lane.b32.xlu0 %v1196, 110
      %v1634 = vpop.permute.xlu0 %1633
      %v1635 = vsel %vm773, %v1630, %v1632
      %v1636 = vsel %vm773, %v1632, %v1634
      %v1639 = vsel %vm462, %v1635, 0.0
      %v1640 = vsel %vm463, %v1636, 0.0
      %s1641 = scalar_lea.vmem %s3, 40
      %v1642 = vld [vmem:[%s1641] sm:$0xff]
      %v1644 = vsel %vm1212, %v1642, 0
      %1646 = vmatprep.subr.mxu0 %v1640
      %1647 = vmatpush1.msra.mxu0 %v1639
      %1648 = vmatprep.subr.mxu0 0.0
      %1649 = vmatpush1.msra.mxu0 0.0
      %1650 = vmatprep.subr.mxu0 0.0
      %1651 = vmatpush1.msra.mxu0 0.0
      %1652 = vmatprep.subr.mxu0 0.0
      %1653 = vmatpush1.msra.mxu0 0.0
      %1654 = vmatprep.subr.mxu0 0.0
      %1655 = vmatpush1.msra.mxu0 0.0
      %1656 = vmatprep.subr.mxu0 0.0
      %1657 = vmatpush1.msra.mxu0 0.0
      %1658 = vmatprep.subr.mxu0 0.0
      %1659 = vmatpush1.msra.mxu0 0.0
      %1660 = vmatprep.subr.mxu0 0.0
      %1661 = vmatpush1.msra.mxu0 0.0
      %1662 = vmatprep.subr.mxu0 0.0
      %1663 = vmatpush1.msra.mxu0 0.0
      %1664 = vmatprep.subr.mxu0 0.0
      %1665 = vmatpush1.msra.mxu0 0.0
      %1666 = vmatprep.subr.mxu0 0.0
      %1667 = vmatpush1.msra.mxu0 0.0
      %1668 = vmatprep.subr.mxu0 0.0
      %1669 = vmatpush1.msra.mxu0 0.0
      %1670 = vmatprep.subr.mxu0 0.0
      %1671 = vmatpush1.msra.mxu0 0.0
      %1672 = vmatprep.subr.mxu0 0.0
      %1673 = vmatpush1.msra.mxu0 0.0
      %1674 = vmatprep.subr.mxu0 0.0
      %1675 = vmatpush1.msra.mxu0 0.0
      %1676 = vmatprep.subr.mxu0 0.0
      %1677 = vmatpush1.msra.mxu0 0.0
      %1678 = vmatprep.subr.mxu0 0.0
      %1679 = vmatpush1.msra.mxu0 0.0
      %1680 = vmatprep.subr.mxu0 0.0
      %1681 = vmatpush1.msra.mxu0 0.0
      %1682 = vmatprep.subr.mxu0 0.0
      %1683 = vmatpush1.msra.mxu0 0.0
      %1684 = vmatprep.subr.mxu0 0.0
      %1685 = vmatpush1.msra.mxu0 0.0
      %1686 = vmatprep.subr.mxu0 0.0
      %1687 = vmatpush1.msra.mxu0 0.0
      %1688 = vmatprep.subr.mxu0 0.0
      %1689 = vmatpush1.msra.mxu0 0.0
      %1690 = vmatprep.subr.mxu0 0.0
      %1691 = vmatpush1.msra.mxu0 0.0
      %1692 = vmatprep.subr.mxu0 0.0
      %1693 = vmatpush1.msra.mxu0 0.0
      %1694 = vmatprep.subr.mxu0 0.0
      %1695 = vmatpush1.msra.mxu0 0.0
      %1696 = vmatprep.subr.mxu0 0.0
      %1697 = vmatpush1.msra.mxu0 0.0
      %1698 = vmatprep.subr.mxu0 0.0
      %1699 = vmatpush1.msra.mxu0 0.0
      %1700 = vmatprep.subr.mxu0 0.0
      %1701 = vmatpush1.msra.mxu0 0.0
      %1702 = vmatprep.subr.mxu0 0.0
      %1703 = vmatpush1.msra.mxu0 0.0
      %1704 = vmatprep.subr.mxu0 0.0
      %1705 = vmatpush1.msra.mxu0 0.0
      %1706 = vmatprep.subr.mxu0 0.0
      %1707 = vmatpush1.msra.mxu0 0.0
      %1708 = vmatprep.subr.mxu0 0.0
      %1709 = vmatpush1.msra.mxu0 0.0
      %1710 = vmatprep.mubr.f32.mxu0 0.0
      %1711 = vmatmul.mubr.f32.gmra.mrb[0].mxu0 %v1644
      %v1712 = vpop.f32.mrb[0].mxu0
      %v1713 = vadd.f32 0.0, %v1712
      %v1714 = vpop.f32.mrb[0].mxu0
      %v1715 = vadd.f32 0.0, %v1714
      %1716 = vdwg.mxu0
      %v1717 = vadd.f32 %v1627, %v1713
      %v1718 = vadd.f32 %v1628, %v1715
      %1719 = vrot.lane.b32.xlu0 %v1191, 96
      %v1720 = vpop.permute.xlu0 %1719
      %1721 = vrot.lane.b32.xlu0 %v1192, 96
      %v1722 = vpop.permute.xlu0 %1721
      %1723 = vrot.lane.b32.xlu0 %v1196, 96
      %v1724 = vpop.permute.xlu0 %1723
      %v1725 = vsel %vm875, %v1720, %v1722
      %v1726 = vsel %vm875, %v1722, %v1724
      %v1729 = vsel %vm277, %v1725, 0.0
      %v1730 = vsel %vm278, %v1726, 0.0
      %s1731 = scalar_lea.vmem %s3, 48
      %v1732 = vld [vmem:[%s1731] sm:$0xff]
      %v1734 = vsel %vm1212, %v1732, 0
      %1736 = vmatprep.subr.mxu0 %v1730
      %1737 = vmatpush1.msra.mxu0 %v1729
      %1738 = vmatprep.subr.mxu0 0.0
      %1739 = vmatpush1.msra.mxu0 0.0
      %1740 = vmatprep.subr.mxu0 0.0
      %1741 = vmatpush1.msra.mxu0 0.0
      %1742 = vmatprep.subr.mxu0 0.0
      %1743 = vmatpush1.msra.mxu0 0.0
      %1744 = vmatprep.subr.mxu0 0.0
      %1745 = vmatpush1.msra.mxu0 0.0
      %1746 = vmatprep.subr.mxu0 0.0
      %1747 = vmatpush1.msra.mxu0 0.0
      %1748 = vmatprep.subr.mxu0 0.0
      %1749 = vmatpush1.msra.mxu0 0.0
      %1750 = vmatprep.subr.mxu0 0.0
      %1751 = vmatpush1.msra.mxu0 0.0
      %1752 = vmatprep.subr.mxu0 0.0
      %1753 = vmatpush1.msra.mxu0 0.0
      %1754 = vmatprep.subr.mxu0 0.0
      %1755 = vmatpush1.msra.mxu0 0.0
      %1756 = vmatprep.subr.mxu0 0.0
      %1757 = vmatpush1.msra.mxu0 0.0
      %1758 = vmatprep.subr.mxu0 0.0
      %1759 = vmatpush1.msra.mxu0 0.0
      %1760 = vmatprep.subr.mxu0 0.0
      %1761 = vmatpush1.msra.mxu0 0.0
      %1762 = vmatprep.subr.mxu0 0.0
      %1763 = vmatpush1.msra.mxu0 0.0
      %1764 = vmatprep.subr.mxu0 0.0
      %1765 = vmatpush1.msra.mxu0 0.0
      %1766 = vmatprep.subr.mxu0 0.0
      %1767 = vmatpush1.msra.mxu0 0.0
      %1768 = vmatprep.subr.mxu0 0.0
      %1769 = vmatpush1.msra.mxu0 0.0
      %1770 = vmatprep.subr.mxu0 0.0
      %1771 = vmatpush1.msra.mxu0 0.0
      %1772 = vmatprep.subr.mxu0 0.0
      %1773 = vmatpush1.msra.mxu0 0.0
      %1774 = vmatprep.subr.mxu0 0.0
      %1775 = vmatpush1.msra.mxu0 0.0
      %1776 = vmatprep.subr.mxu0 0.0
      %1777 = vmatpush1.msra.mxu0 0.0
      %1778 = vmatprep.subr.mxu0 0.0
      %1779 = vmatpush1.msra.mxu0 0.0
      %1780 = vmatprep.subr.mxu0 0.0
      %1781 = vmatpush1.msra.mxu0 0.0
      %1782 = vmatprep.subr.mxu0 0.0
      %1783 = vmatpush1.msra.mxu0 0.0
      %1784 = vmatprep.subr.mxu0 0.0
      %1785 = vmatpush1.msra.mxu0 0.0
      %1786 = vmatprep.subr.mxu0 0.0
      %1787 = vmatpush1.msra.mxu0 0.0
      %1788 = vmatprep.subr.mxu0 0.0
      %1789 = vmatpush1.msra.mxu0 0.0
      %1790 = vmatprep.subr.mxu0 0.0
      %1791 = vmatpush1.msra.mxu0 0.0
      %1792 = vmatprep.subr.mxu0 0.0
      %1793 = vmatpush1.msra.mxu0 0.0
      %1794 = vmatprep.subr.mxu0 0.0
      %1795 = vmatpush1.msra.mxu0 0.0
      %1796 = vmatprep.subr.mxu0 0.0
      %1797 = vmatpush1.msra.mxu0 0.0
      %1798 = vmatprep.subr.mxu0 0.0
      %1799 = vmatpush1.msra.mxu0 0.0
      %1800 = vmatprep.mubr.f32.mxu0 0.0
      %1801 = vmatmul.mubr.f32.gmra.mrb[0].mxu0 %v1734
      %v1802 = vpop.f32.mrb[0].mxu0
      %v1803 = vadd.f32 0.0, %v1802
      %v1804 = vpop.f32.mrb[0].mxu0
      %v1805 = vadd.f32 0.0, %v1804
      %1806 = vdwg.mxu0
      %v1807 = vadd.f32 %v1717, %v1803
      %v1808 = vadd.f32 %v1718, %v1805
      %s1809 = scalar_lea.vmem %s3, 56
      %v1810 = vld [vmem:[%s1809] sm:$0xff]
      %1811 = vrot.lane.b32.xlu0 %v1191, 95
      %v1812 = vpop.permute.xlu0 %1811
      %1813 = vrot.lane.b32.xlu0 %v1192, 95
      %v1814 = vpop.permute.xlu0 %1813
      %1815 = vrot.lane.b32.xlu0 %v1196, 95
      %v1816 = vpop.permute.xlu0 %1815
      %v1817 = vsel %vm979, %v1812, %v1814
      %v1818 = vsel %vm979, %v1814, %v1816
      %v1822 = vsel %vm1212, %v1810, 0
      %1824 = vmatprep.subr.mxu0 %v1818
      %1825 = vmatpush1.msra.mxu0 %v1817
      %1826 = vmatprep.subr.mxu0 0.0
      %1827 = vmatpush1.msra.mxu0 0.0
      %1828 = vmatprep.subr.mxu0 0.0
      %1829 = vmatpush1.msra.mxu0 0.0
      %1830 = vmatprep.subr.mxu0 0.0
      %1831 = vmatpush1.msra.mxu0 0.0
      %1832 = vmatprep.subr.mxu0 0.0
      %1833 = vmatpush1.msra.mxu0 0.0
      %1834 = vmatprep.subr.mxu0 0.0
      %1835 = vmatpush1.msra.mxu0 0.0
      %1836 = vmatprep.subr.mxu0 0.0
      %1837 = vmatpush1.msra.mxu0 0.0
      %1838 = vmatprep.subr.mxu0 0.0
      %1839 = vmatpush1.msra.mxu0 0.0
      %1840 = vmatprep.subr.mxu0 0.0
      %1841 = vmatpush1.msra.mxu0 0.0
      %1842 = vmatprep.subr.mxu0 0.0
      %1843 = vmatpush1.msra.mxu0 0.0
      %1844 = vmatprep.subr.mxu0 0.0
      %1845 = vmatpush1.msra.mxu0 0.0
      %1846 = vmatprep.subr.mxu0 0.0
      %1847 = vmatpush1.msra.mxu0 0.0
      %1848 = vmatprep.subr.mxu0 0.0
      %1849 = vmatpush1.msra.mxu0 0.0
      %1850 = vmatprep.subr.mxu0 0.0
      %1851 = vmatpush1.msra.mxu0 0.0
      %1852 = vmatprep.subr.mxu0 0.0
      %1853 = vmatpush1.msra.mxu0 0.0
      %1854 = vmatprep.subr.mxu0 0.0
      %1855 = vmatpush1.msra.mxu0 0.0
      %1856 = vmatprep.subr.mxu0 0.0
      %1857 = vmatpush1.msra.mxu0 0.0
      %1858 = vmatprep.subr.mxu0 0.0
      %1859 = vmatpush1.msra.mxu0 0.0
      %1860 = vmatprep.subr.mxu0 0.0
      %1861 = vmatpush1.msra.mxu0 0.0
      %1862 = vmatprep.subr.mxu0 0.0
      %1863 = vmatpush1.msra.mxu0 0.0
      %1864 = vmatprep.subr.mxu0 0.0
      %1865 = vmatpush1.msra.mxu0 0.0
      %1866 = vmatprep.subr.mxu0 0.0
      %1867 = vmatpush1.msra.mxu0 0.0
      %1868 = vmatprep.subr.mxu0 0.0
      %1869 = vmatpush1.msra.mxu0 0.0
      %1870 = vmatprep.subr.mxu0 0.0
      %1871 = vmatpush1.msra.mxu0 0.0
      %1872 = vmatprep.subr.mxu0 0.0
      %1873 = vmatpush1.msra.mxu0 0.0
      %1874 = vmatprep.subr.mxu0 0.0
      %1875 = vmatpush1.msra.mxu0 0.0
      %1876 = vmatprep.subr.mxu0 0.0
      %1877 = vmatpush1.msra.mxu0 0.0
      %1878 = vmatprep.subr.mxu0 0.0
      %1879 = vmatpush1.msra.mxu0 0.0
      %1880 = vmatprep.subr.mxu0 0.0
      %1881 = vmatpush1.msra.mxu0 0.0
      %1882 = vmatprep.subr.mxu0 0.0
      %1883 = vmatpush1.msra.mxu0 0.0
      %1884 = vmatprep.subr.mxu0 0.0
      %1885 = vmatpush1.msra.mxu0 0.0
      %1886 = vmatprep.subr.mxu0 0.0
      %1887 = vmatpush1.msra.mxu0 0.0
      %1888 = vmatprep.mubr.f32.mxu0 0.0
      %1889 = vmatmul.mubr.f32.gmra.mrb[0].mxu0 %v1822
      %v1890 = vpop.f32.mrb[0].mxu0
      %v1891 = vadd.f32 0.0, %v1890
      %v1892 = vpop.f32.mrb[0].mxu0
      %v1893 = vadd.f32 0.0, %v1892
      %1894 = vdwg.mxu0
      %v1895 = vadd.f32 %v1807, %v1891
      %v1896 = vadd.f32 %v1808, %v1893
      %1897 = vrot.lane.b32.xlu0 %v1191, 94
      %v1898 = vpop.permute.xlu0 %1897
      %1899 = vrot.lane.b32.xlu0 %v1192, 94
      %v1900 = vpop.permute.xlu0 %1899
      %1901 = vrot.lane.b32.xlu0 %v1196, 94
      %v1902 = vpop.permute.xlu0 %1901
      %v1903 = vsel %vm1073, %v1898, %v1900
      %v1904 = vsel %vm1073, %v1900, %v1902
      %v1907 = vsel %vm462, %v1903, 0.0
      %v1908 = vsel %vm463, %v1904, 0.0
      %s1909 = scalar_lea.vmem %s3, 64
      %v1910 = vld [vmem:[%s1909] sm:$0xff]
      %v1912 = vsel %vm1212, %v1910, 0
      %1914 = vmatprep.subr.mxu0 %v1908
      %1915 = vmatpush1.msra.mxu0 %v1907
      %1916 = vmatprep.subr.mxu0 0.0
      %1917 = vmatpush1.msra.mxu0 0.0
      %1918 = vmatprep.subr.mxu0 0.0
      %1919 = vmatpush1.msra.mxu0 0.0
      %1920 = vmatprep.subr.mxu0 0.0
      %1921 = vmatpush1.msra.mxu0 0.0
      %1922 = vmatprep.subr.mxu0 0.0
      %1923 = vmatpush1.msra.mxu0 0.0
      %1924 = vmatprep.subr.mxu0 0.0
      %1925 = vmatpush1.msra.mxu0 0.0
      %1926 = vmatprep.subr.mxu0 0.0
      %1927 = vmatpush1.msra.mxu0 0.0
      %1928 = vmatprep.subr.mxu0 0.0
      %1929 = vmatpush1.msra.mxu0 0.0
      %1930 = vmatprep.subr.mxu0 0.0
      %1931 = vmatpush1.msra.mxu0 0.0
      %1932 = vmatprep.subr.mxu0 0.0
      %1933 = vmatpush1.msra.mxu0 0.0
      %1934 = vmatprep.subr.mxu0 0.0
      %1935 = vmatpush1.msra.mxu0 0.0
      %1936 = vmatprep.subr.mxu0 0.0
      %1937 = vmatpush1.msra.mxu0 0.0
      %1938 = vmatprep.subr.mxu0 0.0
      %1939 = vmatpush1.msra.mxu0 0.0
      %1940 = vmatprep.subr.mxu0 0.0
      %1941 = vmatpush1.msra.mxu0 0.0
      %1942 = vmatprep.subr.mxu0 0.0
      %1943 = vmatpush1.msra.mxu0 0.0
      %1944 = vmatprep.subr.mxu0 0.0
      %1945 = vmatpush1.msra.mxu0 0.0
      %1946 = vmatprep.subr.mxu0 0.0
      %1947 = vmatpush1.msra.mxu0 0.0
      %1948 = vmatprep.subr.mxu0 0.0
      %1949 = vmatpush1.msra.mxu0 0.0
      %1950 = vmatprep.subr.mxu0 0.0
      %1951 = vmatpush1.msra.mxu0 0.0
      %1952 = vmatprep.subr.mxu0 0.0
      %1953 = vmatpush1.msra.mxu0 0.0
      %1954 = vmatprep.subr.mxu0 0.0
      %1955 = vmatpush1.msra.mxu0 0.0
      %1956 = vmatprep.subr.mxu0 0.0
      %1957 = vmatpush1.msra.mxu0 0.0
      %1958 = vmatprep.subr.mxu0 0.0
      %1959 = vmatpush1.msra.mxu0 0.0
      %1960 = vmatprep.subr.mxu0 0.0
      %1961 = vmatpush1.msra.mxu0 0.0
      %1962 = vmatprep.subr.mxu0 0.0
      %1963 = vmatpush1.msra.mxu0 0.0
      %1964 = vmatprep.subr.mxu0 0.0
      %1965 = vmatpush1.msra.mxu0 0.0
      %1966 = vmatprep.subr.mxu0 0.0
      %1967 = vmatpush1.msra.mxu0 0.0
      %1968 = vmatprep.subr.mxu0 0.0
      %1969 = vmatpush1.msra.mxu0 0.0
      %1970 = vmatprep.subr.mxu0 0.0
      %1971 = vmatpush1.msra.mxu0 0.0
      %1972 = vmatprep.subr.mxu0 0.0
      %1973 = vmatpush1.msra.mxu0 0.0
      %1974 = vmatprep.subr.mxu0 0.0
      %1975 = vmatpush1.msra.mxu0 0.0
      %1976 = vmatprep.subr.mxu0 0.0
      %1977 = vmatpush1.msra.mxu0 0.0
      %1978 = vmatprep.mubr.f32.mxu0 0.0
      %1979 = vmatmul.mubr.f32.gmra.mrb[0].mxu0 %v1912
      %v1980 = vpop.f32.mrb[0].mxu0
      %v1981 = vadd.f32 0.0, %v1980
      %v1982 = vpop.f32.mrb[0].mxu0
      %v1983 = vadd.f32 0.0, %v1982
      %1984 = vdwg.mxu0
      %v1985 = vadd.f32 %v1895, %v1981
      %v1986 = vadd.f32 %v1896, %v1983
      %v1987 = vld [vmem:[%s4] sm:$0xff]
      %1989 = vset.pattern.permute.xlu0 0
      %1990 = vperm.xlu0 %1989, %v1987
      %v1991 = vpop.permute.xlu0 %1990
      %v1993 = vadd.f32 %v1985, %v1991
      %v1994 = vadd.f32 %v1986, %v1991
      %v1995 = vmax.f32 %v1993, 0.0
      %v1996 = vmax.f32 %v1994, 0.0
      %1997 = vst [vmem:[%s224] sm:$0xff] %v1995
      %1998 = vst [vmem:[%s224 + $0x8] sm:$0xff] %v1996
      %p1999 = scmp.lt.s32.totalorder %s16, 1
      %s2000 = scalar_select %p1999, %s16, 1
      %s2001 = smul.addr %s2000, 2
      %s2002 = smul.addr %s2001, 8
      %s2003 = scalar_lea.vmem %s5, %s2002
      // Predicated region
      $region41: #{block_forward.1} parent=39 // pred_check
        %p2004 = pneg %p144
      $region42: #{block_forward.1} parent=39 // pred_check_branch
        %2006 = sbr.rel (%p2004) target = $region44
      $region43: #{block_forward.1} parent=39 // pred_region
        _
      $region44: #{block_forward.1} parent=39 // pred_fallthru
        _
    $region40: #{block_forward.1} parent=5 // pred_fallthru
      _
    %p2007 = scmp.le.s32.totalorder 2, %s11
    // Predicated region
    $region45: #{block_forward.1} parent=5 // pred_check
      %p2008 = pneg %p2007
    $region46: #{block_forward.1} parent=5 // pred_check_branch
      %2010 = sbr.rel (%p2008) target = $region48
    $region47: #{block_forward.1} parent=5 // pred_region
      %s2011 = ssub.s32 %s11, 2
      // Predicated region
      $region49: #{block_forward.1} parent=47 // pred_check
        %p2012 = pneg %p150
      $region50: #{block_forward.1} parent=47 // pred_check_branch
        %2014 = sbr.rel (%p2012) target = $region52
      $region51: #{block_forward.1} parent=47 // pred_region
        %p2015 = scmp.lt.s32.totalorder %s17, 1
        %s2016 = scalar_select %p2015, %s17, 1
        %s2017 = smul.addr %s2016, 2
        %s2018 = smul.addr %s2017, 8
        %s2019 = scalar_lea.vmem %s5, %s2018
      $region52: #{block_forward.1} parent=47 // pred_fallthru
        _
    $region48: #{block_forward.1} parent=5 // pred_fallthru
      _
  $region6: #{block_forward.1} parent=0 // loop_footer
    %s15 = sadd.s32 1, %s11
  $region7: #{block_forward.1} parent=0 // loop_footer_branch
    %10 = sbr.rel target = $region3
  $region8: #{block_forward.1} parent=0 // loop_exit
    _

</llo_original>
